<compile_context>
chip_gen: v7x
topology: tpu7x:2x2x1
jax: 0.10.0
libtpu: 0.0.40
codegen_flags: <defaults>
</compile_context>

<pallas_src>
import jax
import jax.numpy as jnp
import numpy as np
from jax.experimental import pallas as pl
from jax.experimental.pallas import tpu as pltpu


def _lstm_word_kernel(ids_ref, p_ref, h0_ref, c0_ref, whh_ref,
                      wout_ref, bout_ref,
                      logits_ref, hT_ref, cT_ref):
    """Whole-sequence LSTM decoder in a single grid step.

    ids_ref:    (T*Bp, 1)  int32 token ids, rows ordered (t, b)
    p_ref:      (V, 4H)    fused table  emb @ W_ih + b   (gate order i,f,g,o)
    h0/c0_ref:  (Bp, H)    initial state
    whh_ref:    (H, 4H)    hidden->gates weights
    wout_ref:   (H, V)     output projection weight
    bout_ref:   (1, V)     output projection bias
    logits_ref: (T*Bp, V)  logits, rows ordered (t, b)
    hT/cT_ref:  (Bp, H)    final state
    """
    Bp, H = h0_ref.shape
    TB = ids_ref.shape[0]
    T = TB // Bp
    V = p_ref.shape[0]

    # ---- (1) fused embedding + input projection for ALL timesteps ----------
    # Row-gather of the precomputed (V, 4H) table via a one-hot MXU matmul
    # (guaranteed lowering; MXU is otherwise idle here).
    ids = ids_ref[...]                                              # (T*Bp, 1)
    lane_ids = jax.lax.broadcasted_iota(jnp.int32, (TB, V), 1)      # (T*Bp, V)
    onehot = (ids == lane_ids).astype(jnp.float32)
    xw_all = jnp.dot(onehot, p_ref[...],
                     preferred_element_type=jnp.float32)            # (T*Bp, 4H)

    # ---- (2) serial recurrence: only h @ W_hh remains on the critical path --
    w_hh = whh_ref[...]            # loop-invariant weight load, hoisted
    h = h0_ref[...]
    c = c0_ref[...]
    h_steps = []
    # T is a small static constant -> trace-time unrolled loop, all state
    # stays in vregs (no scratch traffic inside the recurrence).
    for t in range(T):
        gates = xw_all[t * Bp:(t + 1) * Bp, :] + jnp.dot(
            h, w_hh, preferred_element_type=jnp.float32)            # (Bp, 4H)
        # gates is exactly one (8,128) f32 vreg: two full-vreg EUP issues
        # instead of four quarter-vreg ones, then pick the gate quarters.
        sig = jax.nn.sigmoid(gates)
        tnh = jnp.tanh(gates)
        i_g = sig[:, 0 * H:1 * H]
        f_g = sig[:, 1 * H:2 * H]
        g_g = tnh[:, 2 * H:3 * H]
        o_g = sig[:, 3 * H:4 * H]
        c = f_g * c + i_g * g_g
        h = o_g * jnp.tanh(c)
        h_steps.append(h)

    hT_ref[...] = h
    cT_ref[...] = c

    # ---- (3) hoisted output projection: one (T*Bp, H) x (H, V) matmul ------
    # Lane-dense 128-wide logits store (no masked partials).
    # TODO(synk): for production vocab sizes, move this onto its own
    # grid axis blocked over V ("parallel") so logits stream to HBM.
    hall = jnp.concatenate(h_steps, axis=0)                         # (T*Bp, H)
    logits_ref[...] = (jnp.dot(hall, wout_ref[...],
                               preferred_element_type=jnp.float32)
                       + bout_ref[...])


def lstm_word_forward(params, hidden, inp):
    """Train-greedy forward of LSTM_word.

    params: dict with 'emb' [V,H], 'w_ih' [H,4H], 'w_hh' [H,4H], 'b' [1,4H],
            'w_out' [H,V], 'b_out' [1,V]
    hidden: (h0, c0) each [B, H]
    inp:    int32 token ids, [B, T]
    returns: logits [B, T, V], (hT, cT)
    """
    h0, c0 = hidden
    B, T = inp.shape
    V, H = params['emb'].shape

    # Pad batch to a multiple of 8 (sublane height); stripped after the kernel.
    # NOTE: B=2 -> Bp=8 means 75% of each MXU row is padding; packing multiple
    # sequences per call (caller-side) is the single biggest throughput lever.
    Bp = max(8, ((B + 7) // 8) * 8)
    pad = Bp - B
    inp_p = jnp.pad(inp, ((0, pad), (0, 0)))
    h0_p = jnp.pad(h0.astype(jnp.float32), ((0, pad), (0, 0)))
    c0_p = jnp.pad(c0.astype(jnp.float32), ((0, pad), (0, 0)))

    # Fused embedding + input-projection table: P[v] = emb[v] @ W_ih + b.
    # (V, 4H) = 64 KB at these shapes; one tiny XLA matmul per call, and the
    # per-token gather happens inside the kernel from VMEM.
    p_tab = (jnp.dot(params['emb'].astype(jnp.float32),
                     params['w_ih'].astype(jnp.float32))
             + params['b'].astype(jnp.float32))                    # (V, 4H)

    # Token ids, time-major rows ordered (t, b); the only per-token DMA.
    ids = inp_p.T.reshape(T * Bp, 1).astype(jnp.int32)

    logits2d, hT_p, cT_p = pl.pallas_call(
        _lstm_word_kernel,
        out_shape=(
            jax.ShapeDtypeStruct((T * Bp, V), jnp.float32),
            jax.ShapeDtypeStruct((Bp, H), jnp.float32),
            jax.ShapeDtypeStruct((Bp, H), jnp.float32),
        ),
        grid_spec=pltpu.PrefetchScalarGridSpec(
            num_scalar_prefetch=0,
            grid=(1,),
            in_specs=[
                pl.BlockSpec((T * Bp, 1), lambda i: (0, 0)),      # token ids
                pl.BlockSpec((V, 4 * H), lambda i: (0, 0)),       # fused P table
                pl.BlockSpec((Bp, H), lambda i: (0, 0)),          # h0
                pl.BlockSpec((Bp, H), lambda i: (0, 0)),          # c0
                pl.BlockSpec((H, 4 * H), lambda i: (0, 0)),       # w_hh
                pl.BlockSpec((H, V), lambda i: (0, 0)),           # w_out
                pl.BlockSpec((1, V), lambda i: (0, 0)),           # b_out
            ],
            out_specs=[
                pl.BlockSpec((T * Bp, V), lambda i: (0, 0)),      # logits (t,b)
                pl.BlockSpec((Bp, H), lambda i: (0, 0)),          # hT
                pl.BlockSpec((Bp, H), lambda i: (0, 0)),          # cT
            ],
        ),
        compiler_params=pltpu.CompilerParams(
            dimension_semantics=("arbitrary",)),
    )(ids, p_tab, h0_p, c0_p, params['w_hh'], params['w_out'], params['b_out'])

    # Strip batch padding, reorder to batch-first (single tiny fused XLA copy).
    logits = jnp.transpose(logits2d.reshape(T, Bp, V)[:, :B, :], (1, 0, 2))
    return logits, (hT_p[:B], cT_p[:B])


def _reference_forward(params, hidden, inp):
    """Pure-JAX reference (lax.scan LSTM) for correctness checking."""
    h0, c0 = hidden
    H = h0.shape[-1]
    x = jnp.take(params['emb'], inp, axis=0).astype(jnp.float32)      # [B, T, H]
    x = jnp.transpose(x, (1, 0, 2))                                   # [T, B, H]

    def step(carry, xt):
        h, c = carry
        gates = xt @ params['w_ih'] + h @ params['w_hh'] + params['b']
        i = jax.nn.sigmoid(gates[:, 0 * H:1 * H])
        f = jax.nn.sigmoid(gates[:, 1 * H:2 * H])
        g = jnp.tanh(gates[:, 2 * H:3 * H])
        o = jax.nn.sigmoid(gates[:, 3 * H:4 * H])
        c_new = f * c + i * g
        h_new = o * jnp.tanh(c_new)
        logit = h_new @ params['w_out'] + params['b_out']
        return (h_new, c_new), logit

    (hT, cT), logits_tm = jax.lax.scan(step, (h0, c0), x)
    return jnp.transpose(logits_tm, (1, 0, 2)), (hT, cT)


if __name__ == "__main__":
    # Small shapes consistent with the module:
    #   hidden_size H = 32, output_size (vocab) V = 128, seq_len T = 8, batch B = 2
    B, T, H, V = 2, 8, 32, 128

    key = jax.random.PRNGKey(0)
    k_emb, k_ih, k_hh, k_b, k_wo, k_bo, k_inp = jax.random.split(key, 7)

    # NOTE: weights are stored already-transposed ((H,4H)/(H,V)); a loader from
    # torch.nn.LSTMCell's (4H,H)/(V,H) layout must transpose.
    params = {
        'emb':   jax.random.normal(k_emb, (V, H), jnp.float32) * 0.1,
        'w_ih':  jax.random.normal(k_ih, (H, 4 * H), jnp.float32) * 0.1,
        'w_hh':  jax.random.normal(k_hh, (H, 4 * H), jnp.float32) * 0.1,
        'b':     jax.random.normal(k_b, (1, 4 * H), jnp.float32) * 0.1,
        'w_out': jax.random.normal(k_wo, (H, V), jnp.float32) * 0.1,
        'b_out': jax.random.normal(k_bo, (1, V), jnp.float32) * 0.1,
    }

    # initHidden() -> zeros; squeeze the seq_len=1 leading dim to [B, H].
    h0 = jnp.zeros((B, H), jnp.float32)
    c0 = jnp.zeros((B, H), jnp.float32)

    inp = jax.random.randint(k_inp, (B, T), 0, V, dtype=jnp.int32)

    logits, (hT, cT) = lstm_word_forward(params, (h0, c0), inp)
    jax.block_until_ready(logits)

    ref_logits, (ref_hT, ref_cT) = _reference_forward(params, (h0, c0), inp)
    np.testing.assert_allclose(np.asarray(logits), np.asarray(ref_logits),
                               rtol=1e-4, atol=1e-4)
    np.testing.assert_allclose(np.asarray(hT), np.asarray(ref_hT),
                               rtol=1e-4, atol=1e-4)
    np.testing.assert_allclose(np.asarray(cT), np.asarray(ref_cT),
                               rtol=1e-4, atol=1e-4)

    print("KERNEL_OK")
</pallas_src>

<mosaic_0001>
module attributes {stable_mosaic.version = 11 : i64} {
  func.func @_lstm_word_kernel(%arg0: i32, %arg1: memref<64x1xi32, #tpu.memory_space<vmem>>, %arg2: memref<128x128xf32, #tpu.memory_space<vmem>>, %arg3: memref<8x32xf32, #tpu.memory_space<vmem>>, %arg4: memref<8x32xf32, #tpu.memory_space<vmem>>, %arg5: memref<32x128xf32, #tpu.memory_space<vmem>>, %arg6: memref<32x128xf32, #tpu.memory_space<vmem>>, %arg7: memref<1x128xf32, #tpu.memory_space<vmem>>, %arg8: memref<64x128xf32, #tpu.memory_space<vmem>>, %arg9: memref<8x32xf32, #tpu.memory_space<vmem>>, %arg10: memref<8x32xf32, #tpu.memory_space<vmem>>) attributes {dimension_semantics = [#tpu.dimension_semantics<arbitrary>], iteration_bounds = array<i64: 1>, scalar_prefetch = 0 : i64, scratch_operands = 0 : i64, tpu.core_type = #tpu.core_type<tc>, window_params = [{pipeline_mode = #tpu.pipeline_mode<synchronous>, transform_indices = @transform_0, window_bounds = array<i64: 64, 1>}, {pipeline_mode = #tpu.pipeline_mode<synchronous>, transform_indices = @transform_1, window_bounds = array<i64: 128, 128>}, {pipeline_mode = #tpu.pipeline_mode<synchronous>, transform_indices = @transform_2, window_bounds = array<i64: 8, 32>}, {pipeline_mode = #tpu.pipeline_mode<synchronous>, transform_indices = @transform_3, window_bounds = array<i64: 8, 32>}, {pipeline_mode = #tpu.pipeline_mode<synchronous>, transform_indices = @transform_4, window_bounds = array<i64: 32, 128>}, {pipeline_mode = #tpu.pipeline_mode<synchronous>, transform_indices = @transform_5, window_bounds = array<i64: 32, 128>}, {pipeline_mode = #tpu.pipeline_mode<synchronous>, transform_indices = @transform_6, window_bounds = array<i64: 1, 128>}, {pipeline_mode = #tpu.pipeline_mode<synchronous>, transform_indices = @transform_7, window_bounds = array<i64: 64, 128>}, {pipeline_mode = #tpu.pipeline_mode<synchronous>, transform_indices = @transform_8, window_bounds = array<i64: 8, 32>}, {pipeline_mode = #tpu.pipeline_mode<synchronous>, transform_indices = @transform_9, window_bounds = array<i64: 8, 32>}]} {
    %c0 = arith.constant 0 : index
    %c0_0 = arith.constant 0 : index
    %0 = vector.load %arg1[%c0, %c0_0] : memref<64x1xi32, #tpu.memory_space<vmem>>, vector<64x1xi32>
    %1 = tpu.iota {dimensions = array<i32: 1>} : vector<64x128xi32>
    %2 = vector.broadcast %0 : vector<64x1xi32> to vector<64x128xi32>
    %3 = arith.cmpi eq, %2, %1 : vector<64x128xi32>
    %4 = arith.extui %3 : vector<64x128xi1> to vector<64x128xi32>
    %5 = arith.sitofp %4 : vector<64x128xi32> to vector<64x128xf32>
    %c0_1 = arith.constant 0 : index
    %c0_2 = arith.constant 0 : index
    %6 = vector.load %arg2[%c0_1, %c0_2] : memref<128x128xf32, #tpu.memory_space<vmem>>, vector<128x128xf32>
    %cst = arith.constant dense<0.000000e+00> : vector<64x128xf32>
    %7 = tpu.matmul %5, %6, %cst {dimension_numbers = #tpu.dot_dimension_numbers<[1], [0], [0], [1], [0, 0, 1, 1], [], []>} : vector<64x128xf32>, vector<128x128xf32>, vector<64x128xf32> -> vector<64x128xf32>
    %c0_3 = arith.constant 0 : index
    %c0_4 = arith.constant 0 : index
    %8 = vector.load %arg5[%c0_3, %c0_4] : memref<32x128xf32, #tpu.memory_space<vmem>>, vector<32x128xf32>
    %c0_5 = arith.constant 0 : index
    %c0_6 = arith.constant 0 : index
    %9 = vector.load %arg3[%c0_5, %c0_6] : memref<8x32xf32, #tpu.memory_space<vmem>>, vector<8x32xf32>
    %c0_7 = arith.constant 0 : index
    %c0_8 = arith.constant 0 : index
    %10 = vector.load %arg4[%c0_7, %c0_8] : memref<8x32xf32, #tpu.memory_space<vmem>>, vector<8x32xf32>
    %11 = vector.extract_strided_slice %7 {offsets = [0, 0], sizes = [8, 128], strides = [1, 1]} : vector<64x128xf32> to vector<8x128xf32>
    %cst_9 = arith.constant dense<0.000000e+00> : vector<8x128xf32>
    %12 = tpu.matmul %9, %8, %cst_9 {dimension_numbers = #tpu.dot_dimension_numbers<[1], [0], [0], [1], [0, 0, 1, 1], [], []>} : vector<8x32xf32>, vector<32x128xf32>, vector<8x128xf32> -> vector<8x128xf32>
    %13 = arith.addf %11, %12 : vector<8x128xf32>
    %14 = arith.negf %13 : vector<8x128xf32>
    %15 = math.exp %14 : vector<8x128xf32>
    %cst_10 = arith.constant 1.000000e+00 : f32
    %16 = vector.broadcast %cst_10 : f32 to vector<8x128xf32>
    %17 = arith.addf %16, %15 : vector<8x128xf32>
    %18 = arith.divf %16, %17 : vector<8x128xf32>
    %19 = math.tanh %13 : vector<8x128xf32>
    %20 = vector.extract_strided_slice %18 {offsets = [0, 0], sizes = [8, 32], strides = [1, 1]} : vector<8x128xf32> to vector<8x32xf32>
    %21 = vector.extract_strided_slice %18 {offsets = [0, 32], sizes = [8, 32], strides = [1, 1]} : vector<8x128xf32> to vector<8x32xf32>
    %22 = vector.extract_strided_slice %19 {offsets = [0, 64], sizes = [8, 32], strides = [1, 1]} : vector<8x128xf32> to vector<8x32xf32>
    %23 = vector.extract_strided_slice %18 {offsets = [0, 96], sizes = [8, 32], strides = [1, 1]} : vector<8x128xf32> to vector<8x32xf32>
    %24 = arith.mulf %21, %10 : vector<8x32xf32>
    %25 = arith.mulf %20, %22 : vector<8x32xf32>
    %26 = arith.addf %24, %25 : vector<8x32xf32>
    %27 = math.tanh %26 : vector<8x32xf32>
    %28 = arith.mulf %23, %27 : vector<8x32xf32>
    %29 = vector.extract_strided_slice %7 {offsets = [8, 0], sizes = [8, 128], strides = [1, 1]} : vector<64x128xf32> to vector<8x128xf32>
    %cst_11 = arith.constant dense<0.000000e+00> : vector<8x128xf32>
    %30 = tpu.matmul %28, %8, %cst_11 {dimension_numbers = #tpu.dot_dimension_numbers<[1], [0], [0], [1], [0, 0, 1, 1], [], []>} : vector<8x32xf32>, vector<32x128xf32>, vector<8x128xf32> -> vector<8x128xf32>
    %31 = arith.addf %29, %30 : vector<8x128xf32>
    %32 = arith.negf %31 : vector<8x128xf32>
    %33 = math.exp %32 : vector<8x128xf32>
    %cst_12 = arith.constant 1.000000e+00 : f32
    %34 = vector.broadcast %cst_12 : f32 to vector<8x128xf32>
    %35 = arith.addf %34, %33 : vector<8x128xf32>
    %36 = arith.divf %34, %35 : vector<8x128xf32>
    %37 = math.tanh %31 : vector<8x128xf32>
    %38 = vector.extract_strided_slice %36 {offsets = [0, 0], sizes = [8, 32], strides = [1, 1]} : vector<8x128xf32> to vector<8x32xf32>
    %39 = vector.extract_strided_slice %36 {offsets = [0, 32], sizes = [8, 32], strides = [1, 1]} : vector<8x128xf32> to vector<8x32xf32>
    %40 = vector.extract_strided_slice %37 {offsets = [0, 64], sizes = [8, 32], strides = [1, 1]} : vector<8x128xf32> to vector<8x32xf32>
    %41 = vector.extract_strided_slice %36 {offsets = [0, 96], sizes = [8, 32], strides = [1, 1]} : vector<8x128xf32> to vector<8x32xf32>
    %42 = arith.mulf %39, %26 : vector<8x32xf32>
    %43 = arith.mulf %38, %40 : vector<8x32xf32>
    %44 = arith.addf %42, %43 : vector<8x32xf32>
    %45 = math.tanh %44 : vector<8x32xf32>
    %46 = arith.mulf %41, %45 : vector<8x32xf32>
    %47 = vector.extract_strided_slice %7 {offsets = [16, 0], sizes = [8, 128], strides = [1, 1]} : vector<64x128xf32> to vector<8x128xf32>
    %cst_13 = arith.constant dense<0.000000e+00> : vector<8x128xf32>
    %48 = tpu.matmul %46, %8, %cst_13 {dimension_numbers = #tpu.dot_dimension_numbers<[1], [0], [0], [1], [0, 0, 1, 1], [], []>} : vector<8x32xf32>, vector<32x128xf32>, vector<8x128xf32> -> vector<8x128xf32>
    %49 = arith.addf %47, %48 : vector<8x128xf32>
    %50 = arith.negf %49 : vector<8x128xf32>
    %51 = math.exp %50 : vector<8x128xf32>
    %cst_14 = arith.constant 1.000000e+00 : f32
    %52 = vector.broadcast %cst_14 : f32 to vector<8x128xf32>
    %53 = arith.addf %52, %51 : vector<8x128xf32>
    %54 = arith.divf %52, %53 : vector<8x128xf32>
    %55 = math.tanh %49 : vector<8x128xf32>
    %56 = vector.extract_strided_slice %54 {offsets = [0, 0], sizes = [8, 32], strides = [1, 1]} : vector<8x128xf32> to vector<8x32xf32>
    %57 = vector.extract_strided_slice %54 {offsets = [0, 32], sizes = [8, 32], strides = [1, 1]} : vector<8x128xf32> to vector<8x32xf32>
    %58 = vector.extract_strided_slice %55 {offsets = [0, 64], sizes = [8, 32], strides = [1, 1]} : vector<8x128xf32> to vector<8x32xf32>
    %59 = vector.extract_strided_slice %54 {offsets = [0, 96], sizes = [8, 32], strides = [1, 1]} : vector<8x128xf32> to vector<8x32xf32>
    %60 = arith.mulf %57, %44 : vector<8x32xf32>
    %61 = arith.mulf %56, %58 : vector<8x32xf32>
    %62 = arith.addf %60, %61 : vector<8x32xf32>
    %63 = math.tanh %62 : vector<8x32xf32>
    %64 = arith.mulf %59, %63 : vector<8x32xf32>
    %65 = vector.extract_strided_slice %7 {offsets = [24, 0], sizes = [8, 128], strides = [1, 1]} : vector<64x128xf32> to vector<8x128xf32>
    %cst_15 = arith.constant dense<0.000000e+00> : vector<8x128xf32>
    %66 = tpu.matmul %64, %8, %cst_15 {dimension_numbers = #tpu.dot_dimension_numbers<[1], [0], [0], [1], [0, 0, 1, 1], [], []>} : vector<8x32xf32>, vector<32x128xf32>, vector<8x128xf32> -> vector<8x128xf32>
    %67 = arith.addf %65, %66 : vector<8x128xf32>
    %68 = arith.negf %67 : vector<8x128xf32>
    %69 = math.exp %68 : vector<8x128xf32>
    %cst_16 = arith.constant 1.000000e+00 : f32
    %70 = vector.broadcast %cst_16 : f32 to vector<8x128xf32>
    %71 = arith.addf %70, %69 : vector<8x128xf32>
    %72 = arith.divf %70, %71 : vector<8x128xf32>
    %73 = math.tanh %67 : vector<8x128xf32>
    %74 = vector.extract_strided_slice %72 {offsets = [0, 0], sizes = [8, 32], strides = [1, 1]} : vector<8x128xf32> to vector<8x32xf32>
    %75 = vector.extract_strided_slice %72 {offsets = [0, 32], sizes = [8, 32], strides = [1, 1]} : vector<8x128xf32> to vector<8x32xf32>
    %76 = vector.extract_strided_slice %73 {offsets = [0, 64], sizes = [8, 32], strides = [1, 1]} : vector<8x128xf32> to vector<8x32xf32>
    %77 = vector.extract_strided_slice %72 {offsets = [0, 96], sizes = [8, 32], strides = [1, 1]} : vector<8x128xf32> to vector<8x32xf32>
    %78 = arith.mulf %75, %62 : vector<8x32xf32>
    %79 = arith.mulf %74, %76 : vector<8x32xf32>
    %80 = arith.addf %78, %79 : vector<8x32xf32>
    %81 = math.tanh %80 : vector<8x32xf32>
    %82 = arith.mulf %77, %81 : vector<8x32xf32>
    %83 = vector.extract_strided_slice %7 {offsets = [32, 0], sizes = [8, 128], strides = [1, 1]} : vector<64x128xf32> to vector<8x128xf32>
    %cst_17 = arith.constant dense<0.000000e+00> : vector<8x128xf32>
    %84 = tpu.matmul %82, %8, %cst_17 {dimension_numbers = #tpu.dot_dimension_numbers<[1], [0], [0], [1], [0, 0, 1, 1], [], []>} : vector<8x32xf32>, vector<32x128xf32>, vector<8x128xf32> -> vector<8x128xf32>
    %85 = arith.addf %83, %84 : vector<8x128xf32>
    %86 = arith.negf %85 : vector<8x128xf32>
    %87 = math.exp %86 : vector<8x128xf32>
    %cst_18 = arith.constant 1.000000e+00 : f32
    %88 = vector.broadcast %cst_18 : f32 to vector<8x128xf32>
    %89 = arith.addf %88, %87 : vector<8x128xf32>
    %90 = arith.divf %88, %89 : vector<8x128xf32>
    %91 = math.tanh %85 : vector<8x128xf32>
    %92 = vector.extract_strided_slice %90 {offsets = [0, 0], sizes = [8, 32], strides = [1, 1]} : vector<8x128xf32> to vector<8x32xf32>
    %93 = vector.extract_strided_slice %90 {offsets = [0, 32], sizes = [8, 32], strides = [1, 1]} : vector<8x128xf32> to vector<8x32xf32>
    %94 = vector.extract_strided_slice %91 {offsets = [0, 64], sizes = [8, 32], strides = [1, 1]} : vector<8x128xf32> to vector<8x32xf32>
    %95 = vector.extract_strided_slice %90 {offsets = [0, 96], sizes = [8, 32], strides = [1, 1]} : vector<8x128xf32> to vector<8x32xf32>
    %96 = arith.mulf %93, %80 : vector<8x32xf32>
    %97 = arith.mulf %92, %94 : vector<8x32xf32>
    %98 = arith.addf %96, %97 : vector<8x32xf32>
    %99 = math.tanh %98 : vector<8x32xf32>
    %100 = arith.mulf %95, %99 : vector<8x32xf32>
    %101 = vector.extract_strided_slice %7 {offsets = [40, 0], sizes = [8, 128], strides = [1, 1]} : vector<64x128xf32> to vector<8x128xf32>
    %cst_19 = arith.constant dense<0.000000e+00> : vector<8x128xf32>
    %102 = tpu.matmul %100, %8, %cst_19 {dimension_numbers = #tpu.dot_dimension_numbers<[1], [0], [0], [1], [0, 0, 1, 1], [], []>} : vector<8x32xf32>, vector<32x128xf32>, vector<8x128xf32> -> vector<8x128xf32>
    %103 = arith.addf %101, %102 : vector<8x128xf32>
    %104 = arith.negf %103 : vector<8x128xf32>
    %105 = math.exp %104 : vector<8x128xf32>
    %cst_20 = arith.constant 1.000000e+00 : f32
    %106 = vector.broadcast %cst_20 : f32 to vector<8x128xf32>
    %107 = arith.addf %106, %105 : vector<8x128xf32>
    %108 = arith.divf %106, %107 : vector<8x128xf32>
    %109 = math.tanh %103 : vector<8x128xf32>
    %110 = vector.extract_strided_slice %108 {offsets = [0, 0], sizes = [8, 32], strides = [1, 1]} : vector<8x128xf32> to vector<8x32xf32>
    %111 = vector.extract_strided_slice %108 {offsets = [0, 32], sizes = [8, 32], strides = [1, 1]} : vector<8x128xf32> to vector<8x32xf32>
    %112 = vector.extract_strided_slice %109 {offsets = [0, 64], sizes = [8, 32], strides = [1, 1]} : vector<8x128xf32> to vector<8x32xf32>
    %113 = vector.extract_strided_slice %108 {offsets = [0, 96], sizes = [8, 32], strides = [1, 1]} : vector<8x128xf32> to vector<8x32xf32>
    %114 = arith.mulf %111, %98 : vector<8x32xf32>
    %115 = arith.mulf %110, %112 : vector<8x32xf32>
    %116 = arith.addf %114, %115 : vector<8x32xf32>
    %117 = math.tanh %116 : vector<8x32xf32>
    %118 = arith.mulf %113, %117 : vector<8x32xf32>
    %119 = vector.extract_strided_slice %7 {offsets = [48, 0], sizes = [8, 128], strides = [1, 1]} : vector<64x128xf32> to vector<8x128xf32>
    %cst_21 = arith.constant dense<0.000000e+00> : vector<8x128xf32>
    %120 = tpu.matmul %118, %8, %cst_21 {dimension_numbers = #tpu.dot_dimension_numbers<[1], [0], [0], [1], [0, 0, 1, 1], [], []>} : vector<8x32xf32>, vector<32x128xf32>, vector<8x128xf32> -> vector<8x128xf32>
    %121 = arith.addf %119, %120 : vector<8x128xf32>
    %122 = arith.negf %121 : vector<8x128xf32>
    %123 = math.exp %122 : vector<8x128xf32>
    %cst_22 = arith.constant 1.000000e+00 : f32
    %124 = vector.broadcast %cst_22 : f32 to vector<8x128xf32>
    %125 = arith.addf %124, %123 : vector<8x128xf32>
    %126 = arith.divf %124, %125 : vector<8x128xf32>
    %127 = math.tanh %121 : vector<8x128xf32>
    %128 = vector.extract_strided_slice %126 {offsets = [0, 0], sizes = [8, 32], strides = [1, 1]} : vector<8x128xf32> to vector<8x32xf32>
    %129 = vector.extract_strided_slice %126 {offsets = [0, 32], sizes = [8, 32], strides = [1, 1]} : vector<8x128xf32> to vector<8x32xf32>
    %130 = vector.extract_strided_slice %127 {offsets = [0, 64], sizes = [8, 32], strides = [1, 1]} : vector<8x128xf32> to vector<8x32xf32>
    %131 = vector.extract_strided_slice %126 {offsets = [0, 96], sizes = [8, 32], strides = [1, 1]} : vector<8x128xf32> to vector<8x32xf32>
    %132 = arith.mulf %129, %116 : vector<8x32xf32>
    %133 = arith.mulf %128, %130 : vector<8x32xf32>
    %134 = arith.addf %132, %133 : vector<8x32xf32>
    %135 = math.tanh %134 : vector<8x32xf32>
    %136 = arith.mulf %131, %135 : vector<8x32xf32>
    %137 = vector.extract_strided_slice %7 {offsets = [56, 0], sizes = [8, 128], strides = [1, 1]} : vector<64x128xf32> to vector<8x128xf32>
    %cst_23 = arith.constant dense<0.000000e+00> : vector<8x128xf32>
    %138 = tpu.matmul %136, %8, %cst_23 {dimension_numbers = #tpu.dot_dimension_numbers<[1], [0], [0], [1], [0, 0, 1, 1], [], []>} : vector<8x32xf32>, vector<32x128xf32>, vector<8x128xf32> -> vector<8x128xf32>
    %139 = arith.addf %137, %138 : vector<8x128xf32>
    %140 = arith.negf %139 : vector<8x128xf32>
    %141 = math.exp %140 : vector<8x128xf32>
    %cst_24 = arith.constant 1.000000e+00 : f32
    %142 = vector.broadcast %cst_24 : f32 to vector<8x128xf32>
    %143 = arith.addf %142, %141 : vector<8x128xf32>
    %144 = arith.divf %142, %143 : vector<8x128xf32>
    %145 = math.tanh %139 : vector<8x128xf32>
    %146 = vector.extract_strided_slice %144 {offsets = [0, 0], sizes = [8, 32], strides = [1, 1]} : vector<8x128xf32> to vector<8x32xf32>
    %147 = vector.extract_strided_slice %144 {offsets = [0, 32], sizes = [8, 32], strides = [1, 1]} : vector<8x128xf32> to vector<8x32xf32>
    %148 = vector.extract_strided_slice %145 {offsets = [0, 64], sizes = [8, 32], strides = [1, 1]} : vector<8x128xf32> to vector<8x32xf32>
    %149 = vector.extract_strided_slice %144 {offsets = [0, 96], sizes = [8, 32], strides = [1, 1]} : vector<8x128xf32> to vector<8x32xf32>
    %150 = arith.mulf %147, %134 : vector<8x32xf32>
    %151 = arith.mulf %146, %148 : vector<8x32xf32>
    %152 = arith.addf %150, %151 : vector<8x32xf32>
    %153 = math.tanh %152 : vector<8x32xf32>
    %154 = arith.mulf %149, %153 : vector<8x32xf32>
    %c0_25 = arith.constant 0 : index
    %c0_26 = arith.constant 0 : index
    %155 = vector.load %arg9[%c0_25, %c0_26] : memref<8x32xf32, #tpu.memory_space<vmem>>, vector<8x32xf32>
    tpu.vector_store %arg9[%c0_25, %c0_26], %154 {strides = array<i32>} : memref<8x32xf32, #tpu.memory_space<vmem>>, vector<8x32xf32>,
    %c0_27 = arith.constant 0 : index
    %c0_28 = arith.constant 0 : index
    %156 = vector.load %arg10[%c0_27, %c0_28] : memref<8x32xf32, #tpu.memory_space<vmem>>, vector<8x32xf32>
    tpu.vector_store %arg10[%c0_27, %c0_28], %152 {strides = array<i32>} : memref<8x32xf32, #tpu.memory_space<vmem>>, vector<8x32xf32>,
    %157 = tpu.concatenate %28, %46, %64, %82, %100, %118, %136, %154 in 0 : vector<8x32xf32>, vector<8x32xf32>, vector<8x32xf32>, vector<8x32xf32>, vector<8x32xf32>, vector<8x32xf32>, vector<8x32xf32>, vector<8x32xf32> -> vector<64x32xf32>
    %c0_29 = arith.constant 0 : index
    %c0_30 = arith.constant 0 : index
    %158 = vector.load %arg6[%c0_29, %c0_30] : memref<32x128xf32, #tpu.memory_space<vmem>>, vector<32x128xf32>
    %cst_31 = arith.constant dense<0.000000e+00> : vector<64x128xf32>
    %159 = tpu.matmul %157, %158, %cst_31 {dimension_numbers = #tpu.dot_dimension_numbers<[1], [0], [0], [1], [0, 0, 1, 1], [], []>} : vector<64x32xf32>, vector<32x128xf32>, vector<64x128xf32> -> vector<64x128xf32>
    %c0_32 = arith.constant 0 : index
    %c0_33 = arith.constant 0 : index
    %160 = vector.load %arg7[%c0_32, %c0_33] : memref<1x128xf32, #tpu.memory_space<vmem>>, vector<1x128xf32>
    %161 = vector.broadcast %160 : vector<1x128xf32> to vector<64x128xf32>
    %162 = arith.addf %159, %161 : vector<64x128xf32>
    %c0_34 = arith.constant 0 : index
    %c0_35 = arith.constant 0 : index
    %163 = vector.load %arg8[%c0_34, %c0_35] : memref<64x128xf32, #tpu.memory_space<vmem>>, vector<64x128xf32>
    tpu.vector_store %arg8[%c0_34, %c0_35], %162 {strides = array<i32>} : memref<64x128xf32, #tpu.memory_space<vmem>>, vector<64x128xf32>,
    return
  }
  func.func @transform_0(%arg0: i32) -> (i32, i32) {
    %c0_i32 = arith.constant 0 : i32
    %c0_i32_0 = arith.constant 0 : i32
    %c0_i32_1 = arith.constant 0 : i32
    return %c0_i32, %c0_i32_0 : i32, i32
  }
  func.func @transform_1(%arg0: i32) -> (i32, i32) {
    %c0_i32 = arith.constant 0 : i32
    %c0_i32_0 = arith.constant 0 : i32
    %c0_i32_1 = arith.constant 0 : i32
    return %c0_i32, %c0_i32_0 : i32, i32
  }
  func.func @transform_2(%arg0: i32) -> (i32, i32) {
    %c0_i32 = arith.constant 0 : i32
    %c0_i32_0 = arith.constant 0 : i32
    %c0_i32_1 = arith.constant 0 : i32
    return %c0_i32, %c0_i32_0 : i32, i32
  }
  func.func @transform_3(%arg0: i32) -> (i32, i32) {
    %c0_i32 = arith.constant 0 : i32
    %c0_i32_0 = arith.constant 0 : i32
    %c0_i32_1 = arith.constant 0 : i32
    return %c0_i32, %c0_i32_0 : i32, i32
  }
  func.func @transform_4(%arg0: i32) -> (i32, i32) {
    %c0_i32 = arith.constant 0 : i32
    %c0_i32_0 = arith.constant 0 : i32
    %c0_i32_1 = arith.constant 0 : i32
    return %c0_i32, %c0_i32_0 : i32, i32
  }
  func.func @transform_5(%arg0: i32) -> (i32, i32) {
    %c0_i32 = arith.constant 0 : i32
    %c0_i32_0 = arith.constant 0 : i32
    %c0_i32_1 = arith.constant 0 : i32
    return %c0_i32, %c0_i32_0 : i32, i32
  }
  func.func @transform_6(%arg0: i32) -> (i32, i32) {
    %c0_i32 = arith.constant 0 : i32
    %c0_i32_0 = arith.constant 0 : i32
    %c0_i32_1 = arith.constant 0 : i32
    return %c0_i32, %c0_i32_0 : i32, i32
  }
  func.func @transform_7(%arg0: i32) -> (i32, i32) {
    %c0_i32 = arith.constant 0 : i32
    %c0_i32_0 = arith.constant 0 : i32
    %c0_i32_1 = arith.constant 0 : i32
    return %c0_i32, %c0_i32_0 : i32, i32
  }
  func.func @transform_8(%arg0: i32) -> (i32, i32) {
    %c0_i32 = arith.constant 0 : i32
    %c0_i32_0 = arith.constant 0 : i32
    %c0_i32_1 = arith.constant 0 : i32
    return %c0_i32, %c0_i32_0 : i32, i32
  }
  func.func @transform_9(%arg0: i32) -> (i32, i32) {
    %c0_i32 = arith.constant 0 : i32
    %c0_i32_0 = arith.constant 0 : i32
    %c0_i32_1 = arith.constant 0 : i32
    return %c0_i32, %c0_i32_0 : i32, i32
  }
}

</mosaic_0001>

<llo_original>
// kernel: tpu_custom_call.1
$region0: #{tpu_custom_call.1}
  #allocation0 [shape = 'u32[]', space=smem, size = 0x4, offset = 0x4, fixed_abs, tag = 'smem constant byte address 0x4 - core index']
  #allocation1 [shape = 'u32[144,128]{1,0:T(1,128)}', space=vmem, size = 0x12000, scoped, tag = 'internal scratch']
  %s0 = inlined_call_operand.vmem [shape: s32[64,1], index: 0, kind: input, shape index: {}]
  %s1 = inlined_call_operand.hbm [shape: f32[128,128], index: 1, kind: input, shape index: {}]
  %s2 = inlined_call_operand.vmem [shape: f32[8,32], index: 2, kind: input, shape index: {}]
  %s3 = inlined_call_operand.hbm [shape: f32[8,32], index: 3, kind: input, shape index: {}]
  %s4 = inlined_call_operand.vmem [shape: f32[32,128], index: 4, kind: input, shape index: {}]
  %s5 = inlined_call_operand.vmem [shape: f32[32,128], index: 5, kind: input, shape index: {}]
  %s6 = inlined_call_operand.vmem [shape: f32[1,128], index: 6, kind: input, shape index: {}]
  %s7 = inlined_call_operand.hbm [shape: f32[64,128], index: 7, kind: output, shape index: {0}]
  %s8 = inlined_call_operand.hbm [shape: f32[8,32], index: 8, kind: output, shape index: {1}]
  %s9 = inlined_call_operand.hbm [shape: f32[8,32], index: 9, kind: output, shape index: {2}]
  %10 = xla_tuple %s7, %s8, %s9
  %s11 = sld [smem:[#allocation0]]
  $region62: #{tpu_custom_call.1} parent=0
    _
  %s13 = ssub.s32 1, %s11
  %s14 = scalar_select 0, %s13, %s11
  $region1: #{tpu_custom_call.1} parent=0
    #allocation2 [shape = 'u8[65536]{0}', space=vmem, size = 0x10000, scoped, tag = 'input window, operand 1, single buffered']
    #allocation3 [shape = 's32[1]{0}', space=sflag, size = 0x4, scoped, tag = 'scoped memory for tpu_custom_call.1']
    #allocation4 [shape = 's32[1]{0}', space=sflag, size = 0x4, scoped, tag = 'scoped memory for tpu_custom_call.1']
    #allocation5 [shape = 'u8[4096]{0}', space=vmem, size = 0x1000, scoped, tag = 'input window, operand 3, single buffered']
    #allocation6 [shape = 's32[1]{0}', space=sflag, size = 0x4, scoped, tag = 'scoped memory for tpu_custom_call.1']
    #allocation7 [shape = 'u8[32768]{0}', space=vmem, size = 0x8000, scoped, tag = 'output window, operand 0, single buffered']
    #allocation8 [shape = 'u8[4096]{0}', space=vmem, size = 0x1000, scoped, tag = 'output window, operand 1, single buffered']
    #allocation9 [shape = 's32[1]{0}', space=sflag, size = 0x4, scoped, tag = 'scoped memory for tpu_custom_call.1']
    #allocation10 [shape = 'u8[4096]{0}', space=vmem, size = 0x1000, scoped, tag = 'output window, operand 2, single buffered']
    %15 = vsyncpa [#allocation3], 0
    %16 = vsyncpa [#allocation6], 0
    %17 = vsyncpa [#allocation4], 0
    %18 = vsyncpa [#allocation9], 0
    // Predicated region
    $region2: #{tpu_custom_call.1} parent=1 // pred_check
      _
    $region3: #{tpu_custom_call.1} parent=1 // pred_check_branch
      %20 = sbr.rel (0) target = $region5
    $region4: #{tpu_custom_call.1} parent=1 // pred_region
      _
    $region5: #{tpu_custom_call.1} parent=1 // pred_fallthru
      _
    // Predicated region
    $region6: #{tpu_custom_call.1} parent=1 // pred_check
      _
    $region7: #{tpu_custom_call.1} parent=1 // pred_check_branch
      %22 = sbr.rel (0) target = $region9
    $region8: #{tpu_custom_call.1} parent=1 // pred_region
      %s24 = ssub.s32 2048, 2048
      %25 = vsyncadd [#allocation3], %s24
      %s26 = sshll.u32 [#allocation2], 4
      %s27 = int_to_ptr.vmem [resolvable:$true] %s26
      %32 = dma.hbm_to_vmem [thread:$0]  %s1, 2048, %s27, [#allocation3], 128, 128, 8
    $region9: #{tpu_custom_call.1} parent=1 // pred_fallthru
      _
    // Predicated region
    $region10: #{tpu_custom_call.1} parent=1 // pred_check
      _
    $region11: #{tpu_custom_call.1} parent=1 // pred_check_branch
      %34 = sbr.rel (0) target = $region13
    $region12: #{tpu_custom_call.1} parent=1 // pred_region
      _
    $region13: #{tpu_custom_call.1} parent=1 // pred_fallthru
      _
    // Predicated region
    $region14: #{tpu_custom_call.1} parent=1 // pred_check
      _
    $region15: #{tpu_custom_call.1} parent=1 // pred_check_branch
      %36 = sbr.rel (0) target = $region17
    $region16: #{tpu_custom_call.1} parent=1 // pred_region
      %s38 = ssub.s32 128, 128
      %39 = vsyncadd [#allocation6], %s38
      %s41 = sshll.u32 [#allocation5], 4
      %s42 = int_to_ptr.vmem [resolvable:$true] %s41
      %44 = dma.hbm_to_vmem [thread:$0]  %s3, 128, %s42, [#allocation6]
    $region17: #{tpu_custom_call.1} parent=1 // pred_fallthru
      _
    // Predicated region
    $region18: #{tpu_custom_call.1} parent=1 // pred_check
      _
    $region19: #{tpu_custom_call.1} parent=1 // pred_check_branch
      %46 = sbr.rel (0) target = $region21
    $region20: #{tpu_custom_call.1} parent=1 // pred_region
      _
    $region21: #{tpu_custom_call.1} parent=1 // pred_fallthru
      _
    // Predicated region
    $region22: #{tpu_custom_call.1} parent=1 // pred_check
      _
    $region23: #{tpu_custom_call.1} parent=1 // pred_check_branch
      %48 = sbr.rel (0) target = $region25
    $region24: #{tpu_custom_call.1} parent=1 // pred_region
      _
    $region25: #{tpu_custom_call.1} parent=1 // pred_fallthru
      _
    // Predicated region
    $region26: #{tpu_custom_call.1} parent=1 // pred_check
      _
    $region27: #{tpu_custom_call.1} parent=1 // pred_check_branch
      %50 = sbr.rel (0) target = $region29
    $region28: #{tpu_custom_call.1} parent=1 // pred_region
      _
    $region29: #{tpu_custom_call.1} parent=1 // pred_fallthru
      _
    // Predicated region
    $region30: #{tpu_custom_call.1} parent=1 // pred_check
      _
    $region31: #{tpu_custom_call.1} parent=1 // pred_check_branch
      %52 = sbr.rel (0) target = $region33
    $region32: #{tpu_custom_call.1} parent=1 // pred_region
      %53 = dma.done [#allocation3], 2048
    $region33: #{tpu_custom_call.1} parent=1 // pred_fallthru
      _
    // Predicated region
    $region34: #{tpu_custom_call.1} parent=1 // pred_check
      _
    $region35: #{tpu_custom_call.1} parent=1 // pred_check_branch
      %55 = sbr.rel (0) target = $region37
    $region36: #{tpu_custom_call.1} parent=1 // pred_region
      %56 = dma.done [#allocation6], 128
    $region37: #{tpu_custom_call.1} parent=1 // pred_fallthru
      _
    %v57 = vld [vmem:[%s0] sm:$0xff]
    %v58 = vld [vmem:[%s0 + $0x8] sm:$0xff]
    %v59 = vld [vmem:[%s0 + $0x10] sm:$0xff]
    %v60 = vld [vmem:[%s0 + $0x18] sm:$0xff]
    %v61 = vld [vmem:[%s0 + $0x20] sm:$0xff]
    %v62 = vld [vmem:[%s0 + $0x28] sm:$0xff]
    %v63 = vld [vmem:[%s0 + $0x30] sm:$0xff]
    %v64 = vld [vmem:[%s0 + $0x38] sm:$0xff]
    %v65 = vlaneseq
    %v66 = vand.u32 %v65, 127
    %67 = vset.pattern.permute.xlu0 0
    %68 = vperm.xlu0 %67, %v57
    %v69 = vpop.permute.xlu0 %68
    %70 = vset.pattern.permute.xlu0 0
    %71 = vperm.xlu0 %70, %v58
    %v72 = vpop.permute.xlu0 %71
    %73 = vset.pattern.permute.xlu0 0
    %74 = vperm.xlu0 %73, %v59
    %v75 = vpop.permute.xlu0 %74
    %76 = vset.pattern.permute.xlu0 0
    %77 = vperm.xlu0 %76, %v60
    %v78 = vpop.permute.xlu0 %77
    %79 = vset.pattern.permute.xlu0 0
    %80 = vperm.xlu0 %79, %v61
    %v81 = vpop.permute.xlu0 %80
    %82 = vset.pattern.permute.xlu0 0
    %83 = vperm.xlu0 %82, %v62
    %v84 = vpop.permute.xlu0 %83
    %85 = vset.pattern.permute.xlu0 0
    %86 = vperm.xlu0 %85, %v63
    %v87 = vpop.permute.xlu0 %86
    %88 = vset.pattern.permute.xlu0 0
    %89 = vperm.xlu0 %88, %v64
    %v90 = vpop.permute.xlu0 %89
    %vm91 = vcmp.eq.s32.totalorder %v69, %v66
    %vm92 = vcmp.eq.s32.totalorder %v72, %v66
    %vm93 = vcmp.eq.s32.totalorder %v75, %v66
    %vm94 = vcmp.eq.s32.totalorder %v78, %v66
    %vm95 = vcmp.eq.s32.totalorder %v81, %v66
    %vm96 = vcmp.eq.s32.totalorder %v84, %v66
    %vm97 = vcmp.eq.s32.totalorder %v87, %v66
    %vm98 = vcmp.eq.s32.totalorder %v90, %v66
    %v99 = vsel %vm91, 1, 0
    %v100 = vsel %vm92, 1, 0
    %v101 = vsel %vm93, 1, 0
    %v102 = vsel %vm94, 1, 0
    %v103 = vsel %vm95, 1, 0
    %v104 = vsel %vm96, 1, 0
    %v105 = vsel %vm97, 1, 0
    %v106 = vsel %vm98, 1, 0
    %v107 = vcvt.s32.f32 %v99
    %v108 = vcvt.s32.f32 %v100
    %v109 = vcvt.s32.f32 %v101
    %v110 = vcvt.s32.f32 %v102
    %v111 = vcvt.s32.f32 %v103
    %v112 = vcvt.s32.f32 %v104
    %v113 = vcvt.s32.f32 %v105
    %v114 = vcvt.s32.f32 %v106
    %v115 = vld [vmem:[#allocation2] sm:$0xff]
    %v116 = vld [vmem:[#allocation2 + $0x8] sm:$0xff]
    %v117 = vld [vmem:[#allocation2 + $0x10] sm:$0xff]
    %v118 = vld [vmem:[#allocation2 + $0x18] sm:$0xff]
    %v119 = vld [vmem:[#allocation2 + $0x20] sm:$0xff]
    %v120 = vld [vmem:[#allocation2 + $0x28] sm:$0xff]
    %v121 = vld [vmem:[#allocation2 + $0x30] sm:$0xff]
    %v122 = vld [vmem:[#allocation2 + $0x38] sm:$0xff]
    %v123 = vld [vmem:[#allocation2 + $0x40] sm:$0xff]
    %v124 = vld [vmem:[#allocation2 + $0x48] sm:$0xff]
    %v125 = vld [vmem:[#allocation2 + $0x50] sm:$0xff]
    %v126 = vld [vmem:[#allocation2 + $0x58] sm:$0xff]
    %v127 = vld [vmem:[#allocation2 + $0x60] sm:$0xff]
    %v128 = vld [vmem:[#allocation2 + $0x68] sm:$0xff]
    %v129 = vld [vmem:[#allocation2 + $0x70] sm:$0xff]
    %v130 = vld [vmem:[#allocation2 + $0x78] sm:$0xff]
    %131 = vmatprep.subr.mxu0 0.0
    %132 = vmatpush1.msra.mxu0 %v115
    %133 = vmatprep.subr.mxu0 0.0
    %134 = vmatpush1.msra.mxu0 %v116
    %135 = vmatprep.subr.mxu0 0.0
    %136 = vmatpush1.msra.mxu0 %v117
    %137 = vmatprep.subr.mxu0 0.0
    %138 = vmatpush1.msra.mxu0 %v118
    %139 = vmatprep.subr.mxu0 0.0
    %140 = vmatpush1.msra.mxu0 %v119
    %141 = vmatprep.subr.mxu0 0.0
    %142 = vmatpush1.msra.mxu0 %v120
    %143 = vmatprep.subr.mxu0 0.0
    %144 = vmatpush1.msra.mxu0 %v121
    %145 = vmatprep.subr.mxu0 0.0
    %146 = vmatpush1.msra.mxu0 %v122
    %147 = vmatprep.subr.mxu0 0.0
    %148 = vmatpush1.msra.mxu0 %v123
    %149 = vmatprep.subr.mxu0 0.0
    %150 = vmatpush1.msra.mxu0 %v124
    %151 = vmatprep.subr.mxu0 0.0
    %152 = vmatpush1.msra.mxu0 %v125
    %153 = vmatprep.subr.mxu0 0.0
    %154 = vmatpush1.msra.mxu0 %v126
    %155 = vmatprep.subr.mxu0 0.0
    %156 = vmatpush1.msra.mxu0 %v127
    %157 = vmatprep.subr.mxu0 0.0
    %158 = vmatpush1.msra.mxu0 %v128
    %159 = vmatprep.subr.mxu0 0.0
    %160 = vmatpush1.msra.mxu0 %v129
    %161 = vmatprep.subr.mxu0 0.0
    %162 = vmatpush1.msra.mxu0 %v130
    %163 = vmatprep.subr.mxu0 0.0
    %164 = vmatpush1.msra.mxu0 0.0
    %165 = vmatprep.subr.mxu0 0.0
    %166 = vmatpush1.msra.mxu0 0.0
    %167 = vmatprep.subr.mxu0 0.0
    %168 = vmatpush1.msra.mxu0 0.0
    %169 = vmatprep.subr.mxu0 0.0
    %170 = vmatpush1.msra.mxu0 0.0
    %171 = vmatprep.subr.mxu0 0.0
    %172 = vmatpush1.msra.mxu0 0.0
    %173 = vmatprep.subr.mxu0 0.0
    %174 = vmatpush1.msra.mxu0 0.0
    %175 = vmatprep.subr.mxu0 0.0
    %176 = vmatpush1.msra.mxu0 0.0
    %177 = vmatprep.subr.mxu0 0.0
    %178 = vmatpush1.msra.mxu0 0.0
    %179 = vmatprep.subr.mxu0 0.0
    %180 = vmatpush1.msra.mxu0 0.0
    %181 = vmatprep.subr.mxu0 0.0
    %182 = vmatpush1.msra.mxu0 0.0
    %183 = vmatprep.subr.mxu0 0.0
    %184 = vmatpush1.msra.mxu0 0.0
    %185 = vmatprep.subr.mxu0 0.0
    %186 = vmatpush1.msra.mxu0 0.0
    %187 = vmatprep.subr.mxu0 0.0
    %188 = vmatpush1.msra.mxu0 0.0
    %189 = vmatprep.subr.mxu0 0.0
    %190 = vmatpush1.msra.mxu0 0.0
    %191 = vmatprep.subr.mxu0 0.0
    %192 = vmatpush1.msra.mxu0 0.0
    %193 = vmatprep.subr.mxu0 0.0
    %194 = vmatpush1.msra.mxu0 0.0
    %195 = vmatprep.mubr.f32.mxu0 0.0
    %196 = vmatmul.mubr.f32.gmra.mrb[0].mxu0 %v107
    %v197 = vpop.f32.mrb[0].mxu0
    %v198 = vadd.f32 0.0, %v197
    %v199 = vpop.f32.mrb[0].mxu0
    %200 = vmatprep.mubr.f32.mxu0 0.0
    %201 = vmatmul.mubr.f32.gmra.mrb[0].mxu0 %v108
    %v202 = vpop.f32.mrb[0].mxu0
    %v203 = vadd.f32 0.0, %v202
    %v204 = vpop.f32.mrb[0].mxu0
    %205 = vmatprep.mubr.f32.mxu0 0.0
    %206 = vmatmul.mubr.f32.gmra.mrb[0].mxu0 %v109
    %v207 = vpop.f32.mrb[0].mxu0
    %v208 = vadd.f32 0.0, %v207
    %v209 = vpop.f32.mrb[0].mxu0
    %210 = vmatprep.mubr.f32.mxu0 0.0
    %211 = vmatmul.mubr.f32.gmra.mrb[0].mxu0 %v110
    %v212 = vpop.f32.mrb[0].mxu0
    %v213 = vadd.f32 0.0, %v212
    %v214 = vpop.f32.mrb[0].mxu0
    %215 = vmatprep.mubr.f32.mxu0 0.0
    %216 = vmatmul.mubr.f32.gmra.mrb[0].mxu0 %v111
    %v217 = vpop.f32.mrb[0].mxu0
    %v218 = vadd.f32 0.0, %v217
    %v219 = vpop.f32.mrb[0].mxu0
    %220 = vmatprep.mubr.f32.mxu0 0.0
    %221 = vmatmul.mubr.f32.gmra.mrb[0].mxu0 %v112
    %v222 = vpop.f32.mrb[0].mxu0
    %v223 = vadd.f32 0.0, %v222
    %v224 = vpop.f32.mrb[0].mxu0
    %225 = vmatprep.mubr.f32.mxu0 0.0
    %226 = vmatmul.mubr.f32.gmra.mrb[0].mxu0 %v113
    %v227 = vpop.f32.mrb[0].mxu0
    %v228 = vadd.f32 0.0, %v227
    %v229 = vpop.f32.mrb[0].mxu0
    %230 = vmatprep.mubr.f32.mxu0 0.0
    %231 = vmatmul.mubr.f32.gmra.mrb[0].mxu0 %v114
    %v232 = vpop.f32.mrb[0].mxu0
    %v233 = vadd.f32 0.0, %v232
    %v234 = vpop.f32.mrb[0].mxu0
    %235 = vdwg.mxu0
    %v236 = vld [vmem:[%s4] sm:$0xff]
    %v237 = vld [vmem:[%s4 + $0x8] sm:$0xff]
    %v238 = vld [vmem:[%s4 + $0x10] sm:$0xff]
    %v239 = vld [vmem:[%s4 + $0x18] sm:$0xff]
    %v240 = vld [vmem:[%s2] sm:$0xff]
    %v241 = vld [vmem:[#allocation5] sm:$0xff]
    %vm242 = vcmask 261120
    %v244 = vsel %vm242, %v240, 0
    %246 = vmatprep.subr.mxu0 0.0
    %247 = vmatpush1.msra.mxu0 %v236
    %248 = vmatprep.subr.mxu0 0.0
    %249 = vmatpush1.msra.mxu0 %v237
    %250 = vmatprep.subr.mxu0 0.0
    %251 = vmatpush1.msra.mxu0 %v238
    %252 = vmatprep.subr.mxu0 0.0
    %253 = vmatpush1.msra.mxu0 %v239
    %254 = vmatprep.subr.mxu0 0.0
    %255 = vmatpush1.msra.mxu0 0.0
    %256 = vmatprep.subr.mxu0 0.0
    %257 = vmatpush1.msra.mxu0 0.0
    %258 = vmatprep.subr.mxu0 0.0
    %259 = vmatpush1.msra.mxu0 0.0
    %260 = vmatprep.subr.mxu0 0.0
    %261 = vmatpush1.msra.mxu0 0.0
    %262 = vmatprep.subr.mxu0 0.0
    %263 = vmatpush1.msra.mxu0 0.0
    %264 = vmatprep.subr.mxu0 0.0
    %265 = vmatpush1.msra.mxu0 0.0
    %266 = vmatprep.subr.mxu0 0.0
    %267 = vmatpush1.msra.mxu0 0.0
    %268 = vmatprep.subr.mxu0 0.0
    %269 = vmatpush1.msra.mxu0 0.0
    %270 = vmatprep.subr.mxu0 0.0
    %271 = vmatpush1.msra.mxu0 0.0
    %272 = vmatprep.subr.mxu0 0.0
    %273 = vmatpush1.msra.mxu0 0.0
    %274 = vmatprep.subr.mxu0 0.0
    %275 = vmatpush1.msra.mxu0 0.0
    %276 = vmatprep.subr.mxu0 0.0
    %277 = vmatpush1.msra.mxu0 0.0
    %278 = vmatprep.subr.mxu0 0.0
    %279 = vmatpush1.msra.mxu0 0.0
    %280 = vmatprep.subr.mxu0 0.0
    %281 = vmatpush1.msra.mxu0 0.0
    %282 = vmatprep.subr.mxu0 0.0
    %283 = vmatpush1.msra.mxu0 0.0
    %284 = vmatprep.subr.mxu0 0.0
    %285 = vmatpush1.msra.mxu0 0.0
    %286 = vmatprep.subr.mxu0 0.0
    %287 = vmatpush1.msra.mxu0 0.0
    %288 = vmatprep.subr.mxu0 0.0
    %289 = vmatpush1.msra.mxu0 0.0
    %290 = vmatprep.subr.mxu0 0.0
    %291 = vmatpush1.msra.mxu0 0.0
    %292 = vmatprep.subr.mxu0 0.0
    %293 = vmatpush1.msra.mxu0 0.0
    %294 = vmatprep.subr.mxu0 0.0
    %295 = vmatpush1.msra.mxu0 0.0
    %296 = vmatprep.subr.mxu0 0.0
    %297 = vmatpush1.msra.mxu0 0.0
    %298 = vmatprep.subr.mxu0 0.0
    %299 = vmatpush1.msra.mxu0 0.0
    %300 = vmatprep.subr.mxu0 0.0
    %301 = vmatpush1.msra.mxu0 0.0
    %302 = vmatprep.subr.mxu0 0.0
    %303 = vmatpush1.msra.mxu0 0.0
    %304 = vmatprep.subr.mxu0 0.0
    %305 = vmatpush1.msra.mxu0 0.0
    %306 = vmatprep.subr.mxu0 0.0
    %307 = vmatpush1.msra.mxu0 0.0
    %308 = vmatprep.subr.mxu0 0.0
    %309 = vmatpush1.msra.mxu0 0.0
    %310 = vmatprep.mubr.f32.mxu0 0.0
    %311 = vmatmul.mubr.f32.gmra.mrb[0].mxu0 %v244
    %v312 = vpop.f32.mrb[0].mxu0
    %v313 = vadd.f32 0.0, %v312
    %v314 = vpop.f32.mrb[0].mxu0
    %315 = vdwg.mxu0
    %v316 = vadd.f32 %v198, %v313
    %v317 = vxor.u32 %v316, 2147483648
    %v318 = vmul.f32 %v317, 1.442695
    %v319 = vpow.pop %v318
    %v320 = vadd.f32 %v319, 1.0
    %v321 = vrcp.pop %v320
    %v322 = vmul.f32 1.0, %v321
    %v323 = vtanh.pop %v316
    %325 = vrot.lane.b32.xlu0 %v241, 32
    %v326 = vpop.permute.xlu0 %325
    %v328 = vmul.f32 %v322, %v326
    %330 = vrot.lane.b32.xlu0 %v323, 64
    %v331 = vpop.permute.xlu0 %330
    %v333 = vmul.f32 %v322, %v331
    %335 = vrot.lane.b32.xlu0 %v333, 32
    %v336 = vpop.permute.xlu0 %335
    %v338 = vadd.f32 %v328, %v336
    %v339 = vtanh.pop %v338
    %341 = vrot.lane.b32.xlu0 %v339, 64
    %v342 = vpop.permute.xlu0 %341
    %v344 = vmul.f32 %v322, %v342
    %346 = vrot.lane.b32.xlu0 %v344, 32
    %v347 = vpop.permute.xlu0 %346
    %v348 = vsel %vm242, %v347, 0
    %350 = vmatprep.subr.mxu0 0.0
    %351 = vmatpush1.msra.mxu0 %v236
    %352 = vmatprep.subr.mxu0 0.0
    %353 = vmatpush1.msra.mxu0 %v237
    %354 = vmatprep.subr.mxu0 0.0
    %355 = vmatpush1.msra.mxu0 %v238
    %356 = vmatprep.subr.mxu0 0.0
    %357 = vmatpush1.msra.mxu0 %v239
    %358 = vmatprep.subr.mxu0 0.0
    %359 = vmatpush1.msra.mxu0 0.0
    %360 = vmatprep.subr.mxu0 0.0
    %361 = vmatpush1.msra.mxu0 0.0
    %362 = vmatprep.subr.mxu0 0.0
    %363 = vmatpush1.msra.mxu0 0.0
    %364 = vmatprep.subr.mxu0 0.0
    %365 = vmatpush1.msra.mxu0 0.0
    %366 = vmatprep.subr.mxu0 0.0
    %367 = vmatpush1.msra.mxu0 0.0
    %368 = vmatprep.subr.mxu0 0.0
    %369 = vmatpush1.msra.mxu0 0.0
    %370 = vmatprep.subr.mxu0 0.0
    %371 = vmatpush1.msra.mxu0 0.0
    %372 = vmatprep.subr.mxu0 0.0
    %373 = vmatpush1.msra.mxu0 0.0
    %374 = vmatprep.subr.mxu0 0.0
    %375 = vmatpush1.msra.mxu0 0.0
    %376 = vmatprep.subr.mxu0 0.0
    %377 = vmatpush1.msra.mxu0 0.0
    %378 = vmatprep.subr.mxu0 0.0
    %379 = vmatpush1.msra.mxu0 0.0
    %380 = vmatprep.subr.mxu0 0.0
    %381 = vmatpush1.msra.mxu0 0.0
    %382 = vmatprep.subr.mxu0 0.0
    %383 = vmatpush1.msra.mxu0 0.0
    %384 = vmatprep.subr.mxu0 0.0
    %385 = vmatpush1.msra.mxu0 0.0
    %386 = vmatprep.subr.mxu0 0.0
    %387 = vmatpush1.msra.mxu0 0.0
    %388 = vmatprep.subr.mxu0 0.0
    %389 = vmatpush1.msra.mxu0 0.0
    %390 = vmatprep.subr.mxu0 0.0
    %391 = vmatpush1.msra.mxu0 0.0
    %392 = vmatprep.subr.mxu0 0.0
    %393 = vmatpush1.msra.mxu0 0.0
    %394 = vmatprep.subr.mxu0 0.0
    %395 = vmatpush1.msra.mxu0 0.0
    %396 = vmatprep.subr.mxu0 0.0
    %397 = vmatpush1.msra.mxu0 0.0
    %398 = vmatprep.subr.mxu0 0.0
    %399 = vmatpush1.msra.mxu0 0.0
    %400 = vmatprep.subr.mxu0 0.0
    %401 = vmatpush1.msra.mxu0 0.0
    %402 = vmatprep.subr.mxu0 0.0
    %403 = vmatpush1.msra.mxu0 0.0
    %404 = vmatprep.subr.mxu0 0.0
    %405 = vmatpush1.msra.mxu0 0.0
    %406 = vmatprep.subr.mxu0 0.0
    %407 = vmatpush1.msra.mxu0 0.0
    %408 = vmatprep.subr.mxu0 0.0
    %409 = vmatpush1.msra.mxu0 0.0
    %410 = vmatprep.subr.mxu0 0.0
    %411 = vmatpush1.msra.mxu0 0.0
    %412 = vmatprep.subr.mxu0 0.0
    %413 = vmatpush1.msra.mxu0 0.0
    %414 = vmatprep.mubr.f32.mxu0 0.0
    %415 = vmatmul.mubr.f32.gmra.mrb[0].mxu0 %v348
    %v416 = vpop.f32.mrb[0].mxu0
    %v417 = vadd.f32 0.0, %v416
    %v418 = vpop.f32.mrb[0].mxu0
    %419 = vdwg.mxu0
    %v420 = vadd.f32 %v203, %v417
    %v421 = vxor.u32 %v420, 2147483648
    %v422 = vmul.f32 %v421, 1.442695
    %v423 = vpow.pop %v422
    %v424 = vadd.f32 %v423, 1.0
    %v425 = vrcp.pop %v424
    %v426 = vmul.f32 1.0, %v425
    %v427 = vtanh.pop %v420
    %v428 = vmul.f32 %v426, %v338
    %430 = vrot.lane.b32.xlu0 %v427, 64
    %v431 = vpop.permute.xlu0 %430
    %v433 = vmul.f32 %v426, %v431
    %435 = vrot.lane.b32.xlu0 %v433, 32
    %v436 = vpop.permute.xlu0 %435
    %v438 = vadd.f32 %v428, %v436
    %v439 = vtanh.pop %v438
    %441 = vrot.lane.b32.xlu0 %v439, 64
    %v442 = vpop.permute.xlu0 %441
    %v444 = vmul.f32 %v426, %v442
    %446 = vrot.lane.b32.xlu0 %v444, 32
    %v447 = vpop.permute.xlu0 %446
    %v448 = vsel %vm242, %v447, 0
    %450 = vmatprep.subr.mxu0 0.0
    %451 = vmatpush1.msra.mxu0 %v236
    %452 = vmatprep.subr.mxu0 0.0
    %453 = vmatpush1.msra.mxu0 %v237
    %454 = vmatprep.subr.mxu0 0.0
    %455 = vmatpush1.msra.mxu0 %v238
    %456 = vmatprep.subr.mxu0 0.0
    %457 = vmatpush1.msra.mxu0 %v239
    %458 = vmatprep.subr.mxu0 0.0
    %459 = vmatpush1.msra.mxu0 0.0
    %460 = vmatprep.subr.mxu0 0.0
    %461 = vmatpush1.msra.mxu0 0.0
    %462 = vmatprep.subr.mxu0 0.0
    %463 = vmatpush1.msra.mxu0 0.0
    %464 = vmatprep.subr.mxu0 0.0
    %465 = vmatpush1.msra.mxu0 0.0
    %466 = vmatprep.subr.mxu0 0.0
    %467 = vmatpush1.msra.mxu0 0.0
    %468 = vmatprep.subr.mxu0 0.0
    %469 = vmatpush1.msra.mxu0 0.0
    %470 = vmatprep.subr.mxu0 0.0
    %471 = vmatpush1.msra.mxu0 0.0
    %472 = vmatprep.subr.mxu0 0.0
    %473 = vmatpush1.msra.mxu0 0.0
    %474 = vmatprep.subr.mxu0 0.0
    %475 = vmatpush1.msra.mxu0 0.0
    %476 = vmatprep.subr.mxu0 0.0
    %477 = vmatpush1.msra.mxu0 0.0
    %478 = vmatprep.subr.mxu0 0.0
    %479 = vmatpush1.msra.mxu0 0.0
    %480 = vmatprep.subr.mxu0 0.0
    %481 = vmatpush1.msra.mxu0 0.0
    %482 = vmatprep.subr.mxu0 0.0
    %483 = vmatpush1.msra.mxu0 0.0
    %484 = vmatprep.subr.mxu0 0.0
    %485 = vmatpush1.msra.mxu0 0.0
    %486 = vmatprep.subr.mxu0 0.0
    %487 = vmatpush1.msra.mxu0 0.0
    %488 = vmatprep.subr.mxu0 0.0
    %489 = vmatpush1.msra.mxu0 0.0
    %490 = vmatprep.subr.mxu0 0.0
    %491 = vmatpush1.msra.mxu0 0.0
    %492 = vmatprep.subr.mxu0 0.0
    %493 = vmatpush1.msra.mxu0 0.0
    %494 = vmatprep.subr.mxu0 0.0
    %495 = vmatpush1.msra.mxu0 0.0
    %496 = vmatprep.subr.mxu0 0.0
    %497 = vmatpush1.msra.mxu0 0.0
    %498 = vmatprep.subr.mxu0 0.0
    %499 = vmatpush1.msra.mxu0 0.0
    %500 = vmatprep.subr.mxu0 0.0
    %501 = vmatpush1.msra.mxu0 0.0
    %502 = vmatprep.subr.mxu0 0.0
    %503 = vmatpush1.msra.mxu0 0.0
    %504 = vmatprep.subr.mxu0 0.0
    %505 = vmatpush1.msra.mxu0 0.0
    %506 = vmatprep.subr.mxu0 0.0
    %507 = vmatpush1.msra.mxu0 0.0
    %508 = vmatprep.subr.mxu0 0.0
    %509 = vmatpush1.msra.mxu0 0.0
    %510 = vmatprep.subr.mxu0 0.0
    %511 = vmatpush1.msra.mxu0 0.0
    %512 = vmatprep.subr.mxu0 0.0
    %513 = vmatpush1.msra.mxu0 0.0
    %514 = vmatprep.mubr.f32.mxu0 0.0
    %515 = vmatmul.mubr.f32.gmra.mrb[0].mxu0 %v448
    %v516 = vpop.f32.mrb[0].mxu0
    %v517 = vadd.f32 0.0, %v516
    %v518 = vpop.f32.mrb[0].mxu0
    %519 = vdwg.mxu0
    %v520 = vadd.f32 %v208, %v517
    %v521 = vxor.u32 %v520, 2147483648
    %v522 = vmul.f32 %v521, 1.442695
    %v523 = vpow.pop %v522
    %v524 = vadd.f32 %v523, 1.0
    %v525 = vrcp.pop %v524
    %v526 = vmul.f32 1.0, %v525
    %v527 = vtanh.pop %v520
    %v528 = vmul.f32 %v526, %v438
    %530 = vrot.lane.b32.xlu0 %v527, 64
    %v531 = vpop.permute.xlu0 %530
    %v533 = vmul.f32 %v526, %v531
    %535 = vrot.lane.b32.xlu0 %v533, 32
    %v536 = vpop.permute.xlu0 %535
    %v538 = vadd.f32 %v528, %v536
    %v539 = vtanh.pop %v538
    %541 = vrot.lane.b32.xlu0 %v539, 64
    %v542 = vpop.permute.xlu0 %541
    %v544 = vmul.f32 %v526, %v542
    %546 = vrot.lane.b32.xlu0 %v544, 32
    %v547 = vpop.permute.xlu0 %546
    %v548 = vsel %vm242, %v547, 0
    %550 = vmatprep.subr.mxu0 0.0
    %551 = vmatpush1.msra.mxu0 %v236
    %552 = vmatprep.subr.mxu0 0.0
    %553 = vmatpush1.msra.mxu0 %v237
    %554 = vmatprep.subr.mxu0 0.0
    %555 = vmatpush1.msra.mxu0 %v238
    %556 = vmatprep.subr.mxu0 0.0
    %557 = vmatpush1.msra.mxu0 %v239
    %558 = vmatprep.subr.mxu0 0.0
    %559 = vmatpush1.msra.mxu0 0.0
    %560 = vmatprep.subr.mxu0 0.0
    %561 = vmatpush1.msra.mxu0 0.0
    %562 = vmatprep.subr.mxu0 0.0
    %563 = vmatpush1.msra.mxu0 0.0
    %564 = vmatprep.subr.mxu0 0.0
    %565 = vmatpush1.msra.mxu0 0.0
    %566 = vmatprep.subr.mxu0 0.0
    %567 = vmatpush1.msra.mxu0 0.0
    %568 = vmatprep.subr.mxu0 0.0
    %569 = vmatpush1.msra.mxu0 0.0
    %570 = vmatprep.subr.mxu0 0.0
    %571 = vmatpush1.msra.mxu0 0.0
    %572 = vmatprep.subr.mxu0 0.0
    %573 = vmatpush1.msra.mxu0 0.0
    %574 = vmatprep.subr.mxu0 0.0
    %575 = vmatpush1.msra.mxu0 0.0
    %576 = vmatprep.subr.mxu0 0.0
    %577 = vmatpush1.msra.mxu0 0.0
    %578 = vmatprep.subr.mxu0 0.0
    %579 = vmatpush1.msra.mxu0 0.0
    %580 = vmatprep.subr.mxu0 0.0
    %581 = vmatpush1.msra.mxu0 0.0
    %582 = vmatprep.subr.mxu0 0.0
    %583 = vmatpush1.msra.mxu0 0.0
    %584 = vmatprep.subr.mxu0 0.0
    %585 = vmatpush1.msra.mxu0 0.0
    %586 = vmatprep.subr.mxu0 0.0
    %587 = vmatpush1.msra.mxu0 0.0
    %588 = vmatprep.subr.mxu0 0.0
    %589 = vmatpush1.msra.mxu0 0.0
    %590 = vmatprep.subr.mxu0 0.0
    %591 = vmatpush1.msra.mxu0 0.0
    %592 = vmatprep.subr.mxu0 0.0
    %593 = vmatpush1.msra.mxu0 0.0
    %594 = vmatprep.subr.mxu0 0.0
    %595 = vmatpush1.msra.mxu0 0.0
    %596 = vmatprep.subr.mxu0 0.0
    %597 = vmatpush1.msra.mxu0 0.0
    %598 = vmatprep.subr.mxu0 0.0
    %599 = vmatpush1.msra.mxu0 0.0
    %600 = vmatprep.subr.mxu0 0.0
    %601 = vmatpush1.msra.mxu0 0.0
    %602 = vmatprep.subr.mxu0 0.0
    %603 = vmatpush1.msra.mxu0 0.0
    %604 = vmatprep.subr.mxu0 0.0
    %605 = vmatpush1.msra.mxu0 0.0
    %606 = vmatprep.subr.mxu0 0.0
    %607 = vmatpush1.msra.mxu0 0.0
    %608 = vmatprep.subr.mxu0 0.0
    %609 = vmatpush1.msra.mxu0 0.0
    %610 = vmatprep.subr.mxu0 0.0
    %611 = vmatpush1.msra.mxu0 0.0
    %612 = vmatprep.subr.mxu0 0.0
    %613 = vmatpush1.msra.mxu0 0.0
    %614 = vmatprep.mubr.f32.mxu0 0.0
    %615 = vmatmul.mubr.f32.gmra.mrb[0].mxu0 %v548
    %v616 = vpop.f32.mrb[0].mxu0
    %v617 = vadd.f32 0.0, %v616
    %v618 = vpop.f32.mrb[0].mxu0
    %619 = vdwg.mxu0
    %v620 = vadd.f32 %v213, %v617
    %v621 = vxor.u32 %v620, 2147483648
    %v622 = vmul.f32 %v621, 1.442695
    %v623 = vpow.pop %v622
    %v624 = vadd.f32 %v623, 1.0
    %v625 = vrcp.pop %v624
    %v626 = vmul.f32 1.0, %v625
    %v627 = vtanh.pop %v620
    %v628 = vmul.f32 %v626, %v538
    %630 = vrot.lane.b32.xlu0 %v627, 64
    %v631 = vpop.permute.xlu0 %630
    %v633 = vmul.f32 %v626, %v631
    %635 = vrot.lane.b32.xlu0 %v633, 32
    %v636 = vpop.permute.xlu0 %635
    %v638 = vadd.f32 %v628, %v636
    %v639 = vtanh.pop %v638
    %641 = vrot.lane.b32.xlu0 %v639, 64
    %v642 = vpop.permute.xlu0 %641
    %v644 = vmul.f32 %v626, %v642
    %646 = vrot.lane.b32.xlu0 %v644, 32
    %v647 = vpop.permute.xlu0 %646
    %v648 = vsel %vm242, %v647, 0
    %650 = vmatprep.subr.mxu0 0.0
    %651 = vmatpush1.msra.mxu0 %v236
    %652 = vmatprep.subr.mxu0 0.0
    %653 = vmatpush1.msra.mxu0 %v237
    %654 = vmatprep.subr.mxu0 0.0
    %655 = vmatpush1.msra.mxu0 %v238
    %656 = vmatprep.subr.mxu0 0.0
    %657 = vmatpush1.msra.mxu0 %v239
    %658 = vmatprep.subr.mxu0 0.0
    %659 = vmatpush1.msra.mxu0 0.0
    %660 = vmatprep.subr.mxu0 0.0
    %661 = vmatpush1.msra.mxu0 0.0
    %662 = vmatprep.subr.mxu0 0.0
    %663 = vmatpush1.msra.mxu0 0.0
    %664 = vmatprep.subr.mxu0 0.0
    %665 = vmatpush1.msra.mxu0 0.0
    %666 = vmatprep.subr.mxu0 0.0
    %667 = vmatpush1.msra.mxu0 0.0
    %668 = vmatprep.subr.mxu0 0.0
    %669 = vmatpush1.msra.mxu0 0.0
    %670 = vmatprep.subr.mxu0 0.0
    %671 = vmatpush1.msra.mxu0 0.0
    %672 = vmatprep.subr.mxu0 0.0
    %673 = vmatpush1.msra.mxu0 0.0
    %674 = vmatprep.subr.mxu0 0.0
    %675 = vmatpush1.msra.mxu0 0.0
    %676 = vmatprep.subr.mxu0 0.0
    %677 = vmatpush1.msra.mxu0 0.0
    %678 = vmatprep.subr.mxu0 0.0
    %679 = vmatpush1.msra.mxu0 0.0
    %680 = vmatprep.subr.mxu0 0.0
    %681 = vmatpush1.msra.mxu0 0.0
    %682 = vmatprep.subr.mxu0 0.0
    %683 = vmatpush1.msra.mxu0 0.0
    %684 = vmatprep.subr.mxu0 0.0
    %685 = vmatpush1.msra.mxu0 0.0
    %686 = vmatprep.subr.mxu0 0.0
    %687 = vmatpush1.msra.mxu0 0.0
    %688 = vmatprep.subr.mxu0 0.0
    %689 = vmatpush1.msra.mxu0 0.0
    %690 = vmatprep.subr.mxu0 0.0
    %691 = vmatpush1.msra.mxu0 0.0
    %692 = vmatprep.subr.mxu0 0.0
    %693 = vmatpush1.msra.mxu0 0.0
    %694 = vmatprep.subr.mxu0 0.0
    %695 = vmatpush1.msra.mxu0 0.0
    %696 = vmatprep.subr.mxu0 0.0
    %697 = vmatpush1.msra.mxu0 0.0
    %698 = vmatprep.subr.mxu0 0.0
    %699 = vmatpush1.msra.mxu0 0.0
    %700 = vmatprep.subr.mxu0 0.0
    %701 = vmatpush1.msra.mxu0 0.0
    %702 = vmatprep.subr.mxu0 0.0
    %703 = vmatpush1.msra.mxu0 0.0
    %704 = vmatprep.subr.mxu0 0.0
    %705 = vmatpush1.msra.mxu0 0.0
    %706 = vmatprep.subr.mxu0 0.0
    %707 = vmatpush1.msra.mxu0 0.0
    %708 = vmatprep.subr.mxu0 0.0
    %709 = vmatpush1.msra.mxu0 0.0
    %710 = vmatprep.subr.mxu0 0.0
    %711 = vmatpush1.msra.mxu0 0.0
    %712 = vmatprep.subr.mxu0 0.0
    %713 = vmatpush1.msra.mxu0 0.0
    %714 = vmatprep.mubr.f32.mxu0 0.0
    %715 = vmatmul.mubr.f32.gmra.mrb[0].mxu0 %v648
    %v716 = vpop.f32.mrb[0].mxu0
    %v717 = vadd.f32 0.0, %v716
    %v718 = vpop.f32.mrb[0].mxu0
    %719 = vdwg.mxu0
    %v720 = vadd.f32 %v218, %v717
    %v721 = vxor.u32 %v720, 2147483648
    %v722 = vmul.f32 %v721, 1.442695
    %v723 = vpow.pop %v722
    %v724 = vadd.f32 %v723, 1.0
    %v725 = vrcp.pop %v724
    %v726 = vmul.f32 1.0, %v725
    %v727 = vtanh.pop %v720
    %v728 = vmul.f32 %v726, %v638
    %730 = vrot.lane.b32.xlu0 %v727, 64
    %v731 = vpop.permute.xlu0 %730
    %v733 = vmul.f32 %v726, %v731
    %735 = vrot.lane.b32.xlu0 %v733, 32
    %v736 = vpop.permute.xlu0 %735
    %v738 = vadd.f32 %v728, %v736
    %v739 = vtanh.pop %v738
    %741 = vrot.lane.b32.xlu0 %v739, 64
    %v742 = vpop.permute.xlu0 %741
    %v744 = vmul.f32 %v726, %v742
    %746 = vrot.lane.b32.xlu0 %v744, 32
    %v747 = vpop.permute.xlu0 %746
    %v748 = vsel %vm242, %v747, 0
    %750 = vmatprep.subr.mxu0 0.0
    %751 = vmatpush1.msra.mxu0 %v236
    %752 = vmatprep.subr.mxu0 0.0
    %753 = vmatpush1.msra.mxu0 %v237
    %754 = vmatprep.subr.mxu0 0.0
    %755 = vmatpush1.msra.mxu0 %v238
    %756 = vmatprep.subr.mxu0 0.0
    %757 = vmatpush1.msra.mxu0 %v239
    %758 = vmatprep.subr.mxu0 0.0
    %759 = vmatpush1.msra.mxu0 0.0
    %760 = vmatprep.subr.mxu0 0.0
    %761 = vmatpush1.msra.mxu0 0.0
    %762 = vmatprep.subr.mxu0 0.0
    %763 = vmatpush1.msra.mxu0 0.0
    %764 = vmatprep.subr.mxu0 0.0
    %765 = vmatpush1.msra.mxu0 0.0
    %766 = vmatprep.subr.mxu0 0.0
    %767 = vmatpush1.msra.mxu0 0.0
    %768 = vmatprep.subr.mxu0 0.0
    %769 = vmatpush1.msra.mxu0 0.0
    %770 = vmatprep.subr.mxu0 0.0
    %771 = vmatpush1.msra.mxu0 0.0
    %772 = vmatprep.subr.mxu0 0.0
    %773 = vmatpush1.msra.mxu0 0.0
    %774 = vmatprep.subr.mxu0 0.0
    %775 = vmatpush1.msra.mxu0 0.0
    %776 = vmatprep.subr.mxu0 0.0
    %777 = vmatpush1.msra.mxu0 0.0
    %778 = vmatprep.subr.mxu0 0.0
    %779 = vmatpush1.msra.mxu0 0.0
    %780 = vmatprep.subr.mxu0 0.0
    %781 = vmatpush1.msra.mxu0 0.0
    %782 = vmatprep.subr.mxu0 0.0
    %783 = vmatpush1.msra.mxu0 0.0
    %784 = vmatprep.subr.mxu0 0.0
    %785 = vmatpush1.msra.mxu0 0.0
    %786 = vmatprep.subr.mxu0 0.0
    %787 = vmatpush1.msra.mxu0 0.0
    %788 = vmatprep.subr.mxu0 0.0
    %789 = vmatpush1.msra.mxu0 0.0
    %790 = vmatprep.subr.mxu0 0.0
    %791 = vmatpush1.msra.mxu0 0.0
    %792 = vmatprep.subr.mxu0 0.0
    %793 = vmatpush1.msra.mxu0 0.0
    %794 = vmatprep.subr.mxu0 0.0
    %795 = vmatpush1.msra.mxu0 0.0
    %796 = vmatprep.subr.mxu0 0.0
    %797 = vmatpush1.msra.mxu0 0.0
    %798 = vmatprep.subr.mxu0 0.0
    %799 = vmatpush1.msra.mxu0 0.0
    %800 = vmatprep.subr.mxu0 0.0
    %801 = vmatpush1.msra.mxu0 0.0
    %802 = vmatprep.subr.mxu0 0.0
    %803 = vmatpush1.msra.mxu0 0.0
    %804 = vmatprep.subr.mxu0 0.0
    %805 = vmatpush1.msra.mxu0 0.0
    %806 = vmatprep.subr.mxu0 0.0
    %807 = vmatpush1.msra.mxu0 0.0
    %808 = vmatprep.subr.mxu0 0.0
    %809 = vmatpush1.msra.mxu0 0.0
    %810 = vmatprep.subr.mxu0 0.0
    %811 = vmatpush1.msra.mxu0 0.0
    %812 = vmatprep.subr.mxu0 0.0
    %813 = vmatpush1.msra.mxu0 0.0
    %814 = vmatprep.mubr.f32.mxu0 0.0
    %815 = vmatmul.mubr.f32.gmra.mrb[0].mxu0 %v748
    %v816 = vpop.f32.mrb[0].mxu0
    %v817 = vadd.f32 0.0, %v816
    %v818 = vpop.f32.mrb[0].mxu0
    %819 = vdwg.mxu0
    %v820 = vadd.f32 %v223, %v817
    %v821 = vxor.u32 %v820, 2147483648
    %v822 = vmul.f32 %v821, 1.442695
    %v823 = vpow.pop %v822
    %v824 = vadd.f32 %v823, 1.0
    %v825 = vrcp.pop %v824
    %v826 = vmul.f32 1.0, %v825
    %v827 = vtanh.pop %v820
    %v828 = vmul.f32 %v826, %v738
    %830 = vrot.lane.b32.xlu0 %v827, 64
    %v831 = vpop.permute.xlu0 %830
    %v833 = vmul.f32 %v826, %v831
    %835 = vrot.lane.b32.xlu0 %v833, 32
    %v836 = vpop.permute.xlu0 %835
    %v838 = vadd.f32 %v828, %v836
    %v839 = vtanh.pop %v838
    %841 = vrot.lane.b32.xlu0 %v839, 64
    %v842 = vpop.permute.xlu0 %841
    %v844 = vmul.f32 %v826, %v842
    %846 = vrot.lane.b32.xlu0 %v844, 32
    %v847 = vpop.permute.xlu0 %846
    %v848 = vsel %vm242, %v847, 0
    %850 = vmatprep.subr.mxu0 0.0
    %851 = vmatpush1.msra.mxu0 %v236
    %852 = vmatprep.subr.mxu0 0.0
    %853 = vmatpush1.msra.mxu0 %v237
    %854 = vmatprep.subr.mxu0 0.0
    %855 = vmatpush1.msra.mxu0 %v238
    %856 = vmatprep.subr.mxu0 0.0
    %857 = vmatpush1.msra.mxu0 %v239
    %858 = vmatprep.subr.mxu0 0.0
    %859 = vmatpush1.msra.mxu0 0.0
    %860 = vmatprep.subr.mxu0 0.0
    %861 = vmatpush1.msra.mxu0 0.0
    %862 = vmatprep.subr.mxu0 0.0
    %863 = vmatpush1.msra.mxu0 0.0
    %864 = vmatprep.subr.mxu0 0.0
    %865 = vmatpush1.msra.mxu0 0.0
    %866 = vmatprep.subr.mxu0 0.0
    %867 = vmatpush1.msra.mxu0 0.0
    %868 = vmatprep.subr.mxu0 0.0
    %869 = vmatpush1.msra.mxu0 0.0
    %870 = vmatprep.subr.mxu0 0.0
    %871 = vmatpush1.msra.mxu0 0.0
    %872 = vmatprep.subr.mxu0 0.0
    %873 = vmatpush1.msra.mxu0 0.0
    %874 = vmatprep.subr.mxu0 0.0
    %875 = vmatpush1.msra.mxu0 0.0
    %876 = vmatprep.subr.mxu0 0.0
    %877 = vmatpush1.msra.mxu0 0.0
    %878 = vmatprep.subr.mxu0 0.0
    %879 = vmatpush1.msra.mxu0 0.0
    %880 = vmatprep.subr.mxu0 0.0
    %881 = vmatpush1.msra.mxu0 0.0
    %882 = vmatprep.subr.mxu0 0.0
    %883 = vmatpush1.msra.mxu0 0.0
    %884 = vmatprep.subr.mxu0 0.0
    %885 = vmatpush1.msra.mxu0 0.0
    %886 = vmatprep.subr.mxu0 0.0
    %887 = vmatpush1.msra.mxu0 0.0
    %888 = vmatprep.subr.mxu0 0.0
    %889 = vmatpush1.msra.mxu0 0.0
    %890 = vmatprep.subr.mxu0 0.0
    %891 = vmatpush1.msra.mxu0 0.0
    %892 = vmatprep.subr.mxu0 0.0
    %893 = vmatpush1.msra.mxu0 0.0
    %894 = vmatprep.subr.mxu0 0.0
    %895 = vmatpush1.msra.mxu0 0.0
    %896 = vmatprep.subr.mxu0 0.0
    %897 = vmatpush1.msra.mxu0 0.0
    %898 = vmatprep.subr.mxu0 0.0
    %899 = vmatpush1.msra.mxu0 0.0
    %900 = vmatprep.subr.mxu0 0.0
    %901 = vmatpush1.msra.mxu0 0.0
    %902 = vmatprep.subr.mxu0 0.0
    %903 = vmatpush1.msra.mxu0 0.0
    %904 = vmatprep.subr.mxu0 0.0
    %905 = vmatpush1.msra.mxu0 0.0
    %906 = vmatprep.subr.mxu0 0.0
    %907 = vmatpush1.msra.mxu0 0.0
    %908 = vmatprep.subr.mxu0 0.0
    %909 = vmatpush1.msra.mxu0 0.0
    %910 = vmatprep.subr.mxu0 0.0
    %911 = vmatpush1.msra.mxu0 0.0
    %912 = vmatprep.subr.mxu0 0.0
    %913 = vmatpush1.msra.mxu0 0.0
    %914 = vmatprep.mubr.f32.mxu0 0.0
    %915 = vmatmul.mubr.f32.gmra.mrb[0].mxu0 %v848
    %v916 = vpop.f32.mrb[0].mxu0
    %v917 = vadd.f32 0.0, %v916
    %v918 = vpop.f32.mrb[0].mxu0
    %919 = vdwg.mxu0
    %v920 = vadd.f32 %v228, %v917
    %v921 = vxor.u32 %v920, 2147483648
    %v922 = vmul.f32 %v921, 1.442695
    %v923 = vpow.pop %v922
    %v924 = vadd.f32 %v923, 1.0
    %v925 = vrcp.pop %v924
    %v926 = vmul.f32 1.0, %v925
    %v927 = vtanh.pop %v920
    %v928 = vmul.f32 %v926, %v838
    %930 = vrot.lane.b32.xlu0 %v927, 64
    %v931 = vpop.permute.xlu0 %930
    %v933 = vmul.f32 %v926, %v931
    %935 = vrot.lane.b32.xlu0 %v933, 32
    %v936 = vpop.permute.xlu0 %935
    %v938 = vadd.f32 %v928, %v936
    %v939 = vtanh.pop %v938
    %941 = vrot.lane.b32.xlu0 %v939, 64
    %v942 = vpop.permute.xlu0 %941
    %v944 = vmul.f32 %v926, %v942
    %946 = vrot.lane.b32.xlu0 %v944, 32
    %v947 = vpop.permute.xlu0 %946
    %v948 = vsel %vm242, %v947, 0
    %950 = vmatprep.subr.mxu0 0.0
    %951 = vmatpush1.msra.mxu0 %v236
    %952 = vmatprep.subr.mxu0 0.0
    %953 = vmatpush1.msra.mxu0 %v237
    %954 = vmatprep.subr.mxu0 0.0
    %955 = vmatpush1.msra.mxu0 %v238
    %956 = vmatprep.subr.mxu0 0.0
    %957 = vmatpush1.msra.mxu0 %v239
    %958 = vmatprep.subr.mxu0 0.0
    %959 = vmatpush1.msra.mxu0 0.0
    %960 = vmatprep.subr.mxu0 0.0
    %961 = vmatpush1.msra.mxu0 0.0
    %962 = vmatprep.subr.mxu0 0.0
    %963 = vmatpush1.msra.mxu0 0.0
    %964 = vmatprep.subr.mxu0 0.0
    %965 = vmatpush1.msra.mxu0 0.0
    %966 = vmatprep.subr.mxu0 0.0
    %967 = vmatpush1.msra.mxu0 0.0
    %968 = vmatprep.subr.mxu0 0.0
    %969 = vmatpush1.msra.mxu0 0.0
    %970 = vmatprep.subr.mxu0 0.0
    %971 = vmatpush1.msra.mxu0 0.0
    %972 = vmatprep.subr.mxu0 0.0
    %973 = vmatpush1.msra.mxu0 0.0
    %974 = vmatprep.subr.mxu0 0.0
    %975 = vmatpush1.msra.mxu0 0.0
    %976 = vmatprep.subr.mxu0 0.0
    %977 = vmatpush1.msra.mxu0 0.0
    %978 = vmatprep.subr.mxu0 0.0
    %979 = vmatpush1.msra.mxu0 0.0
    %980 = vmatprep.subr.mxu0 0.0
    %981 = vmatpush1.msra.mxu0 0.0
    %982 = vmatprep.subr.mxu0 0.0
    %983 = vmatpush1.msra.mxu0 0.0
    %984 = vmatprep.subr.mxu0 0.0
    %985 = vmatpush1.msra.mxu0 0.0
    %986 = vmatprep.subr.mxu0 0.0
    %987 = vmatpush1.msra.mxu0 0.0
    %988 = vmatprep.subr.mxu0 0.0
    %989 = vmatpush1.msra.mxu0 0.0
    %990 = vmatprep.subr.mxu0 0.0
    %991 = vmatpush1.msra.mxu0 0.0
    %992 = vmatprep.subr.mxu0 0.0
    %993 = vmatpush1.msra.mxu0 0.0
    %994 = vmatprep.subr.mxu0 0.0
    %995 = vmatpush1.msra.mxu0 0.0
    %996 = vmatprep.subr.mxu0 0.0
    %997 = vmatpush1.msra.mxu0 0.0
    %998 = vmatprep.subr.mxu0 0.0
    %999 = vmatpush1.msra.mxu0 0.0
    %1000 = vmatprep.subr.mxu0 0.0
    %1001 = vmatpush1.msra.mxu0 0.0
    %1002 = vmatprep.subr.mxu0 0.0
    %1003 = vmatpush1.msra.mxu0 0.0
    %1004 = vmatprep.subr.mxu0 0.0
    %1005 = vmatpush1.msra.mxu0 0.0
    %1006 = vmatprep.subr.mxu0 0.0
    %1007 = vmatpush1.msra.mxu0 0.0
    %1008 = vmatprep.subr.mxu0 0.0
    %1009 = vmatpush1.msra.mxu0 0.0
    %1010 = vmatprep.subr.mxu0 0.0
    %1011 = vmatpush1.msra.mxu0 0.0
    %1012 = vmatprep.subr.mxu0 0.0
    %1013 = vmatpush1.msra.mxu0 0.0
    %1014 = vmatprep.mubr.f32.mxu0 0.0
    %1015 = vmatmul.mubr.f32.gmra.mrb[0].mxu0 %v948
    %v1016 = vpop.f32.mrb[0].mxu0
    %v1017 = vadd.f32 0.0, %v1016
    %v1018 = vpop.f32.mrb[0].mxu0
    %1019 = vdwg.mxu0
    %v1020 = vadd.f32 %v233, %v1017
    %v1021 = vxor.u32 %v1020, 2147483648
    %v1022 = vmul.f32 %v1021, 1.442695
    %v1023 = vpow.pop %v1022
    %v1024 = vadd.f32 %v1023, 1.0
    %v1025 = vrcp.pop %v1024
    %v1026 = vmul.f32 1.0, %v1025
    %v1027 = vtanh.pop %v1020
    %v1028 = vmul.f32 %v1026, %v938
    %1030 = vrot.lane.b32.xlu0 %v1027, 64
    %v1031 = vpop.permute.xlu0 %1030
    %v1033 = vmul.f32 %v1026, %v1031
    %1035 = vrot.lane.b32.xlu0 %v1033, 32
    %v1036 = vpop.permute.xlu0 %1035
    %v1038 = vadd.f32 %v1028, %v1036
    %v1039 = vtanh.pop %v1038
    %1041 = vrot.lane.b32.xlu0 %v1039, 64
    %v1042 = vpop.permute.xlu0 %1041
    %v1044 = vmul.f32 %v1026, %v1042
    %1046 = vrot.lane.b32.xlu0 %v1044, 32
    %v1047 = vpop.permute.xlu0 %1046
    %1049 = vst.msk [vmem:[#allocation8] sm:$0xff] %vm242, %v1047
    %1051 = vrot.lane.b32.xlu0 %v1038, 96
    %v1052 = vpop.permute.xlu0 %1051
    %1054 = vst.msk [vmem:[#allocation10] sm:$0xff] %vm242, %v1052
    %v1055 = vld [vmem:[%s5] sm:$0xff]
    %v1056 = vld [vmem:[%s5 + $0x8] sm:$0xff]
    %v1057 = vld [vmem:[%s5 + $0x10] sm:$0xff]
    %v1058 = vld [vmem:[%s5 + $0x18] sm:$0xff]
    %v1059 = vld [vmem:[%s6] sm:$0x1]
    %v1061 = vlaneseq
    %v1062 = vshrl.u32 %v1061, 7
    %v1063 = vsub.s32 0, %v1062
    %v1064 = vrot.slane %v1059, %v1063
    %v1066 = vsel %vm242, %v1047, 0
    %1068 = vmatprep.subr.mxu0 0.0
    %1069 = vmatpush1.msra.mxu0 %v1055
    %1070 = vmatprep.subr.mxu0 0.0
    %1071 = vmatpush1.msra.mxu0 %v1056
    %1072 = vmatprep.subr.mxu0 0.0
    %1073 = vmatpush1.msra.mxu0 %v1057
    %1074 = vmatprep.subr.mxu0 0.0
    %1075 = vmatpush1.msra.mxu0 %v1058
    %1076 = vmatprep.subr.mxu0 0.0
    %1077 = vmatpush1.msra.mxu0 0.0
    %1078 = vmatprep.subr.mxu0 0.0
    %1079 = vmatpush1.msra.mxu0 0.0
    %1080 = vmatprep.subr.mxu0 0.0
    %1081 = vmatpush1.msra.mxu0 0.0
    %1082 = vmatprep.subr.mxu0 0.0
    %1083 = vmatpush1.msra.mxu0 0.0
    %1084 = vmatprep.subr.mxu0 0.0
    %1085 = vmatpush1.msra.mxu0 0.0
    %1086 = vmatprep.subr.mxu0 0.0
    %1087 = vmatpush1.msra.mxu0 0.0
    %1088 = vmatprep.subr.mxu0 0.0
    %1089 = vmatpush1.msra.mxu0 0.0
    %1090 = vmatprep.subr.mxu0 0.0
    %1091 = vmatpush1.msra.mxu0 0.0
    %1092 = vmatprep.subr.mxu0 0.0
    %1093 = vmatpush1.msra.mxu0 0.0
    %1094 = vmatprep.subr.mxu0 0.0
    %1095 = vmatpush1.msra.mxu0 0.0
    %1096 = vmatprep.subr.mxu0 0.0
    %1097 = vmatpush1.msra.mxu0 0.0
    %1098 = vmatprep.subr.mxu0 0.0
    %1099 = vmatpush1.msra.mxu0 0.0
    %1100 = vmatprep.subr.mxu0 0.0
    %1101 = vmatpush1.msra.mxu0 0.0
    %1102 = vmatprep.subr.mxu0 0.0
    %1103 = vmatpush1.msra.mxu0 0.0
    %1104 = vmatprep.subr.mxu0 0.0
    %1105 = vmatpush1.msra.mxu0 0.0
    %1106 = vmatprep.subr.mxu0 0.0
    %1107 = vmatpush1.msra.mxu0 0.0
    %1108 = vmatprep.subr.mxu0 0.0
    %1109 = vmatpush1.msra.mxu0 0.0
    %1110 = vmatprep.subr.mxu0 0.0
    %1111 = vmatpush1.msra.mxu0 0.0
    %1112 = vmatprep.subr.mxu0 0.0
    %1113 = vmatpush1.msra.mxu0 0.0
    %1114 = vmatprep.subr.mxu0 0.0
    %1115 = vmatpush1.msra.mxu0 0.0
    %1116 = vmatprep.subr.mxu0 0.0
    %1117 = vmatpush1.msra.mxu0 0.0
    %1118 = vmatprep.subr.mxu0 0.0
    %1119 = vmatpush1.msra.mxu0 0.0
    %1120 = vmatprep.subr.mxu0 0.0
    %1121 = vmatpush1.msra.mxu0 0.0
    %1122 = vmatprep.subr.mxu0 0.0
    %1123 = vmatpush1.msra.mxu0 0.0
    %1124 = vmatprep.subr.mxu0 0.0
    %1125 = vmatpush1.msra.mxu0 0.0
    %1126 = vmatprep.subr.mxu0 0.0
    %1127 = vmatpush1.msra.mxu0 0.0
    %1128 = vmatprep.subr.mxu0 0.0
    %1129 = vmatpush1.msra.mxu0 0.0
    %1130 = vmatprep.subr.mxu0 0.0
    %1131 = vmatpush1.msra.mxu0 0.0
    %1132 = vmatprep.mubr.f32.mxu0 0.0
    %1133 = vmatmul.mubr.f32.gmra.mrb[0].mxu0 %v348
    %v1134 = vpop.f32.mrb[0].mxu0
    %v1135 = vadd.f32 %v1064, %v1134
    %v1136 = vpop.f32.mrb[0].mxu0
    %1137 = vmatprep.mubr.f32.mxu0 0.0
    %1138 = vmatmul.mubr.f32.gmra.mrb[0].mxu0 %v448
    %v1139 = vpop.f32.mrb[0].mxu0
    %v1140 = vadd.f32 %v1064, %v1139
    %v1141 = vpop.f32.mrb[0].mxu0
    %1142 = vmatprep.mubr.f32.mxu0 0.0
    %1143 = vmatmul.mubr.f32.gmra.mrb[0].mxu0 %v548
    %v1144 = vpop.f32.mrb[0].mxu0
    %v1145 = vadd.f32 %v1064, %v1144
    %v1146 = vpop.f32.mrb[0].mxu0
    %1147 = vmatprep.mubr.f32.mxu0 0.0
    %1148 = vmatmul.mubr.f32.gmra.mrb[0].mxu0 %v648
    %v1149 = vpop.f32.mrb[0].mxu0
    %v1150 = vadd.f32 %v1064, %v1149
    %v1151 = vpop.f32.mrb[0].mxu0
    %1152 = vmatprep.mubr.f32.mxu0 0.0
    %1153 = vmatmul.mubr.f32.gmra.mrb[0].mxu0 %v748
    %v1154 = vpop.f32.mrb[0].mxu0
    %v1155 = vadd.f32 %v1064, %v1154
    %v1156 = vpop.f32.mrb[0].mxu0
    %1157 = vmatprep.mubr.f32.mxu0 0.0
    %1158 = vmatmul.mubr.f32.gmra.mrb[0].mxu0 %v848
    %v1159 = vpop.f32.mrb[0].mxu0
    %v1160 = vadd.f32 %v1064, %v1159
    %v1161 = vpop.f32.mrb[0].mxu0
    %1162 = vmatprep.mubr.f32.mxu0 0.0
    %1163 = vmatmul.mubr.f32.gmra.mrb[0].mxu0 %v948
    %v1164 = vpop.f32.mrb[0].mxu0
    %v1165 = vadd.f32 %v1064, %v1164
    %v1166 = vpop.f32.mrb[0].mxu0
    %1167 = vmatprep.mubr.f32.mxu0 0.0
    %1168 = vmatmul.mubr.f32.gmra.mrb[0].mxu0 %v1066
    %v1169 = vpop.f32.mrb[0].mxu0
    %v1170 = vadd.f32 %v1064, %v1169
    %v1171 = vpop.f32.mrb[0].mxu0
    %1172 = vdwg.mxu0
    %1173 = vst [vmem:[#allocation7] sm:$0xff] %v1135
    %1174 = vst [vmem:[#allocation7 + $0x8] sm:$0xff] %v1140
    %1175 = vst [vmem:[#allocation7 + $0x10] sm:$0xff] %v1145
    %1176 = vst [vmem:[#allocation7 + $0x18] sm:$0xff] %v1150
    %1177 = vst [vmem:[#allocation7 + $0x20] sm:$0xff] %v1155
    %1178 = vst [vmem:[#allocation7 + $0x28] sm:$0xff] %v1160
    %1179 = vst [vmem:[#allocation7 + $0x30] sm:$0xff] %v1165
    %1180 = vst [vmem:[#allocation7 + $0x38] sm:$0xff] %v1170
    // Predicated region
    $region38: #{tpu_custom_call.1} parent=1 // pred_check
      _
    $region39: #{tpu_custom_call.1} parent=1 // pred_check_branch
      %1182 = sbr.rel (0) target = $region41
    $region40: #{tpu_custom_call.1} parent=1 // pred_region
      %s1184 = ssub.s32 1024, 1024
      %1185 = vsyncadd [#allocation4], %s1184
      %s1186 = sshll.u32 [#allocation7], 4
      %s1187 = int_to_ptr.vmem [resolvable:$true] %s1186
      %1192 = dma.vmem_to_hbm [thread:$0]  %s1187, 1024, %s7, [#allocation4], 128, 128, 8
    $region41: #{tpu_custom_call.1} parent=1 // pred_fallthru
      _
    // Predicated region
    $region42: #{tpu_custom_call.1} parent=1 // pred_check
      _
    $region43: #{tpu_custom_call.1} parent=1 // pred_check_branch
      %1194 = sbr.rel (0) target = $region45
    $region44: #{tpu_custom_call.1} parent=1 // pred_region
      %s1196 = ssub.s32 128, 128
      %1197 = vsyncadd [#allocation9], %s1196
      %s1199 = sshll.u32 [#allocation8], 4
      %s1200 = int_to_ptr.vmem [resolvable:$true] %s1199
      %1202 = dma.vmem_to_hbm [thread:$0]  %s1200, 128, %s8, [#allocation9]
    $region45: #{tpu_custom_call.1} parent=1 // pred_fallthru
      _
    // Predicated region
    $region46: #{tpu_custom_call.1} parent=1 // pred_check
      _
    $region47: #{tpu_custom_call.1} parent=1 // pred_check_branch
      %1204 = sbr.rel (0) target = $region49
    $region48: #{tpu_custom_call.1} parent=1 // pred_region
      %s1206 = ssub.s32 128, 128
      %1207 = vsyncadd [#allocation9], %s1206
      %s1209 = sshll.u32 [#allocation10], 4
      %s1210 = int_to_ptr.vmem [resolvable:$true] %s1209
      %1212 = dma.vmem_to_hbm [thread:$0]  %s1210, 128, %s9, [#allocation9]
    $region49: #{tpu_custom_call.1} parent=1 // pred_fallthru
      _
    // Predicated region
    $region50: #{tpu_custom_call.1} parent=1 // pred_check
      _
    $region51: #{tpu_custom_call.1} parent=1 // pred_check_branch
      %1214 = sbr.rel (0) target = $region53
    $region52: #{tpu_custom_call.1} parent=1 // pred_region
      %1215 = dma.done [#allocation4], 1024
    $region53: #{tpu_custom_call.1} parent=1 // pred_fallthru
      _
    // Predicated region
    $region54: #{tpu_custom_call.1} parent=1 // pred_check
      _
    $region55: #{tpu_custom_call.1} parent=1 // pred_check_branch
      %1217 = sbr.rel (0) target = $region57
    $region56: #{tpu_custom_call.1} parent=1 // pred_region
      %1218 = dma.done [#allocation9], 128
    $region57: #{tpu_custom_call.1} parent=1 // pred_fallthru
      _
    // Predicated region
    $region58: #{tpu_custom_call.1} parent=1 // pred_check
      _
    $region59: #{tpu_custom_call.1} parent=1 // pred_check_branch
      %1220 = sbr.rel (0) target = $region61
    $region60: #{tpu_custom_call.1} parent=1 // pred_region
      %1221 = dma.done [#allocation9], 128
    $region61: #{tpu_custom_call.1} parent=1 // pred_fallthru
      _
    %1222 = vsyncpa [#allocation3], 1
    %1223 = vsyncpa [#allocation6], 1
    %1224 = vsyncpa [#allocation4], 1
    %1225 = vsyncpa [#allocation9], 1

</llo_original>
